<compile_context>
chip_gen: v6e
topology: v6e:2x2x1
jax: 0.10.0
libtpu: 0.0.40
codegen_flags: <defaults>
</compile_context>

<pallas_src>
import jax
import jax.numpy as jnp
from jax.experimental import pallas as pl
from jax.experimental.pallas import tpu as pltpu


def _round_up(n, m):
    return ((n + m - 1) // m) * m


def simple_nn_kernel(xt_ref, w1_ref, b1_ref, w2_ref, b2_ref, out_ref):
    # xt_ref : (D, TM)        bf16  -- x transposed: batch on the lane axis
    # w1_ref : (HP, D)        bf16  -- PyTorch layout (out, in), H padded to mult. of 8
    # b1_ref : (HP, 1)        f32
    # w2_ref : (HP, 1)        f32   -- second-layer weight as a column
    # b2_ref : (1, 1)         f32   -- SMEM scalar
    # out_ref: (TM//128, 128) f32   -- lane-dense output slab

    # Hidden layer on the MXU (bf16 x bf16 -> f32 accumulation):
    #   h^T = W1 @ x^T   -> (HP, TM), lane-dense.
    ht = jnp.dot(w1_ref[...], xt_ref[...], preferred_element_type=jnp.float32)
    ht = jnp.maximum(ht + b1_ref[...], 0.0)          # bias + ReLU, f32 VPU

    # Dropout(p=0.5): identity in eval/inference mode.
    # TODO(synk): training-mode dropout (pltpu.prng_seed + pltpu.prng_random_bits
    # keyed on pl.program_id(0), mask + 1/(1-p) scaling) is not implemented.

    # Output layer (out_features = 1): keep it off the MXU -- VPU multiply +
    # sublane (axis 0) reduction. Result (1, TM) is already lane-major/dense.
    zt = jnp.sum(ht * w2_ref[...], axis=0, keepdims=True) + b2_ref[0, 0]

    yt = 1.0 / (1.0 + jnp.exp(-zt))                   # sigmoid, f32 (EUP)

    # Store as a dense (TM//128, 128) slab: 128-lane-aligned slices of the
    # lane-major result, one full-width store per output row.
    nsub = out_ref.shape[0]
    for r in range(nsub):
        out_ref[r:r + 1, :] = yt[:, r * 128:(r + 1) * 128].astype(out_ref.dtype)


def simple_nn_forward(x, w1, b1, w2, b2, *, block_m=2048, mxu_dtype=jnp.bfloat16):
    """Fused SimpleNN forward pass (eval mode).

    x : (B, D) f32; w1: (H, D); b1: (H,); w2: (1, H); b2: (1,)/scalar  ->  (B, 1) f32.
    """
    B, D = x.shape
    H = w1.shape[0]

    # --- batch tile selection -------------------------------------------------
    TM_UNIT = 1024  # keeps the (tm//128, 128) output block sublane-aligned (>=8 rows)
    b128 = _round_up(B, 128)
    if b128 <= TM_UNIT:
        tm = b128                               # tiny batch: one tile covers everything
    else:
        tm = max(TM_UNIT, (min(int(block_m), b128) // TM_UNIT) * TM_UNIT)
        if _round_up(B, tm) // tm < 2:          # keep >=2 grid steps for v7x dual-TC
            tm = max(TM_UNIT, ((tm // 2) // TM_UNIT) * TM_UNIT)
    b_pad = _round_up(B, tm)
    grid = (b_pad // tm,)

    HP = _round_up(H, 8)                        # H sits on the sublane axis

    # --- operand prep (layout plumbing only; padded rows are sliced off at the end)
    xt = jnp.pad(x, ((0, b_pad - B), (0, 0))).astype(mxu_dtype).T            # (D, b_pad)
    w1p = jnp.pad(jnp.asarray(w1, jnp.float32),
                  ((0, HP - H), (0, 0))).astype(mxu_dtype)                   # (HP, D)
    b1c = jnp.pad(jnp.asarray(b1, jnp.float32).reshape(H, 1),
                  ((0, HP - H), (0, 0)))                                     # (HP, 1)
    w2c = jnp.pad(jnp.asarray(w2, jnp.float32).reshape(H, 1),
                  ((0, HP - H), (0, 0)))                                     # (HP, 1)
    b2s = jnp.asarray(b2, jnp.float32).reshape(1, 1)                         # SMEM scalar

    itemsize = jnp.dtype(mxu_dtype).itemsize
    cost = pl.CostEstimate(
        flops=int(2 * b_pad * D * HP + 4 * b_pad * HP),
        transcendentals=int(b_pad),
        bytes_accessed=int(b_pad * D * itemsize + HP * D * itemsize
                           + 2 * HP * 4 + 4 + b_pad * 4),
    )

    out = pl.pallas_call(
        simple_nn_kernel,
        out_shape=jax.ShapeDtypeStruct((b_pad // 128, 128), jnp.float32),
        grid=grid,
        in_specs=[
            pl.BlockSpec((D, tm), lambda i: (0, i)),      # x^T tile, auto-pipelined
            pl.BlockSpec((HP, D), lambda i: (0, 0)),      # w1, resident in VMEM
            pl.BlockSpec((HP, 1), lambda i: (0, 0)),      # b1 column, resident
            pl.BlockSpec((HP, 1), lambda i: (0, 0)),      # w2 column, resident
            pl.BlockSpec(memory_space=pltpu.MemorySpace.SMEM),  # b2 scalar
        ],
        out_specs=pl.BlockSpec((tm // 128, 128), lambda i: (i, 0)),
        compiler_params=pltpu.CompilerParams(
            dimension_semantics=("parallel",),
        ),
        cost_estimate=cost,
    )(xt, w1p, b1c, w2c, b2s)

    return out.reshape(-1)[:B].reshape(B, 1)


def init_params(key, input_dim, hidden_dim=64):
    """PyTorch nn.Linear-style init: U(-1/sqrt(fan_in), 1/sqrt(fan_in)), (out, in) layout."""
    k1, k2, k3, k4 = jax.random.split(key, 4)
    bound1 = 1.0 / jnp.sqrt(input_dim)
    bound2 = 1.0 / jnp.sqrt(hidden_dim)
    w1 = jax.random.uniform(k1, (hidden_dim, input_dim), jnp.float32, -bound1, bound1)
    b1 = jax.random.uniform(k2, (hidden_dim,), jnp.float32, -bound1, bound1)
    w2 = jax.random.uniform(k3, (1, hidden_dim), jnp.float32, -bound2, bound2)
    b2 = jax.random.uniform(k4, (1,), jnp.float32, -bound2, bound2)
    return w1, b1, w2, b2


if __name__ == "__main__":
    key = jax.random.PRNGKey(0)
    kx, kp = jax.random.split(key)

    batch = 2500          # non-multiple of the tile -> exercises padding + 2 grid steps
    input_dim = 32
    hidden_dim = 64

    x = jax.random.normal(kx, (batch, input_dim), jnp.float32)
    w1, b1, w2, b2 = init_params(kp, input_dim, hidden_dim)

    out = simple_nn_forward(x, w1, b1, w2, b2)          # block_m=2048 -> grid of 2
    out = jax.block_until_ready(out)
    assert out.shape == (batch, 1)

    # Reference with the same bf16 MXU operands (tight tolerance).
    h_bf = jnp.maximum(
        jnp.dot(x.astype(jnp.bfloat16), w1.astype(jnp.bfloat16).T,
                preferred_element_type=jnp.float32) + b1[None, :], 0.0)
    ref_bf16 = jax.nn.sigmoid(h_bf @ w2.T + b2[None, :])
    assert jnp.allclose(out, ref_bf16, atol=2e-3), "mismatch vs bf16-aware reference"

    # Pure f32 eval-mode reference (Dropout == identity); tolerance covers bf16
    # quantization of the MXU inputs.
    ref_f32 = jax.nn.sigmoid(
        jnp.maximum(x @ w1.T + b1[None, :], 0.0) @ w2.T + b2[None, :])
    assert jnp.allclose(out, ref_f32, atol=2e-2), "mismatch vs f32 reference"

    print("KERNEL_OK")
</pallas_src>

<mosaic_0001>
module attributes {stable_mosaic.version = 11 : i64} {
  func.func @simple_nn_kernel(%arg0: i32, %arg1: memref<32x2048xbf16, #tpu.memory_space<vmem>>, %arg2: memref<64x32xbf16, #tpu.memory_space<vmem>>, %arg3: memref<64x1xf32, #tpu.memory_space<vmem>>, %arg4: memref<64x1xf32, #tpu.memory_space<vmem>>, %arg5: memref<1x1xf32, #tpu.memory_space<smem>>, %arg6: memref<16x128xf32, #tpu.memory_space<vmem>>) attributes {dimension_semantics = [#tpu.dimension_semantics<parallel>], iteration_bounds = array<i64: 2>, scalar_prefetch = 0 : i64, scratch_operands = 0 : i64, tpu.core_type = #tpu.core_type<tc>, window_params = [{transform_indices = @transform_0, window_bounds = array<i64: 32, 2048>}, {pipeline_mode = #tpu.pipeline_mode<synchronous>, transform_indices = @transform_1, window_bounds = array<i64: 64, 32>}, {pipeline_mode = #tpu.pipeline_mode<synchronous>, transform_indices = @transform_2, window_bounds = array<i64: 64, 1>}, {pipeline_mode = #tpu.pipeline_mode<synchronous>, transform_indices = @transform_3, window_bounds = array<i64: 64, 1>}, {transform_indices = @transform_4, window_bounds = array<i64: 1, 1>}, {transform_indices = @transform_5, window_bounds = array<i64: 16, 128>}]} {
    %c0 = arith.constant 0 : index
    %c0_0 = arith.constant 0 : index
    %0 = vector.load %arg2[%c0, %c0_0] : memref<64x32xbf16, #tpu.memory_space<vmem>>, vector<64x32xbf16>
    %c0_1 = arith.constant 0 : index
    %c0_2 = arith.constant 0 : index
    %1 = vector.load %arg1[%c0_1, %c0_2] : memref<32x2048xbf16, #tpu.memory_space<vmem>>, vector<32x2048xbf16>
    %cst = arith.constant dense<0.000000e+00> : vector<64x2048xf32>
    %2 = tpu.matmul %0, %1, %cst {dimension_numbers = #tpu.dot_dimension_numbers<[1], [0], [0], [1], [0, 0, 1, 1], [], []>} : vector<64x32xbf16>, vector<32x2048xbf16>, vector<64x2048xf32> -> vector<64x2048xf32>
    %c0_3 = arith.constant 0 : index
    %c0_4 = arith.constant 0 : index
    %3 = vector.load %arg3[%c0_3, %c0_4] : memref<64x1xf32, #tpu.memory_space<vmem>>, vector<64x1xf32>
    %4 = vector.broadcast %3 : vector<64x1xf32> to vector<64x2048xf32>
    %5 = arith.addf %2, %4 : vector<64x2048xf32>
    %cst_5 = arith.constant 0.000000e+00 : f32
    %6 = vector.broadcast %cst_5 : f32 to vector<64x2048xf32>
    %7 = arith.maximumf %5, %6 : vector<64x2048xf32>
    %c0_6 = arith.constant 0 : index
    %c0_7 = arith.constant 0 : index
    %8 = vector.load %arg4[%c0_6, %c0_7] : memref<64x1xf32, #tpu.memory_space<vmem>>, vector<64x1xf32>
    %9 = vector.broadcast %8 : vector<64x1xf32> to vector<64x2048xf32>
    %10 = arith.mulf %7, %9 : vector<64x2048xf32>
    %cst_8 = arith.constant dense<0.000000e+00> : vector<2048xf32>
    %11 = vector.multi_reduction <add>, %10, %cst_8 [0] : vector<64x2048xf32> to vector<2048xf32>
    %12 = vector.shape_cast %11 : vector<2048xf32> to vector<1x2048xf32>
    %c0_9 = arith.constant 0 : index
    %c0_10 = arith.constant 0 : index
    %13 = memref.load %arg5[%c0_9, %c0_10] : memref<1x1xf32, #tpu.memory_space<smem>>
    %14 = vector.broadcast %13 : f32 to vector<1x2048xf32>
    %15 = arith.addf %12, %14 : vector<1x2048xf32>
    %cst_11 = arith.constant 0.000000e+00 : f32
    %16 = vector.broadcast %cst_11 : f32 to vector<1x2048xf32>
    %17 = arith.subf %16, %15 : vector<1x2048xf32>
    %18 = math.exp %17 : vector<1x2048xf32>
    %cst_12 = arith.constant 1.000000e+00 : f32
    %19 = vector.broadcast %cst_12 : f32 to vector<1x2048xf32>
    %20 = arith.addf %19, %18 : vector<1x2048xf32>
    %cst_13 = arith.constant 1.000000e+00 : f32
    %21 = vector.broadcast %cst_13 : f32 to vector<1x2048xf32>
    %22 = arith.divf %21, %20 : vector<1x2048xf32>
    %23 = vector.extract_strided_slice %22 {offsets = [0, 0], sizes = [1, 128], strides = [1, 1]} : vector<1x2048xf32> to vector<1x128xf32>
    %c0_14 = arith.constant 0 : index
    %c0_15 = arith.constant 0 : index
    %24 = vector.load %arg6[%c0_14, %c0_15] : memref<16x128xf32, #tpu.memory_space<vmem>>, vector<1x128xf32>
    tpu.vector_store %arg6[%c0_14, %c0_15], %23 {strides = array<i32>} : memref<16x128xf32, #tpu.memory_space<vmem>>, vector<1x128xf32>,
    %25 = vector.extract_strided_slice %22 {offsets = [0, 128], sizes = [1, 128], strides = [1, 1]} : vector<1x2048xf32> to vector<1x128xf32>
    %c1 = arith.constant 1 : index
    %c0_16 = arith.constant 0 : index
    %26 = vector.load %arg6[%c1, %c0_16] : memref<16x128xf32, #tpu.memory_space<vmem>>, vector<1x128xf32>
    tpu.vector_store %arg6[%c1, %c0_16], %25 {strides = array<i32>} : memref<16x128xf32, #tpu.memory_space<vmem>>, vector<1x128xf32>,
    %27 = vector.extract_strided_slice %22 {offsets = [0, 256], sizes = [1, 128], strides = [1, 1]} : vector<1x2048xf32> to vector<1x128xf32>
    %c2 = arith.constant 2 : index
    %c0_17 = arith.constant 0 : index
    %28 = vector.load %arg6[%c2, %c0_17] : memref<16x128xf32, #tpu.memory_space<vmem>>, vector<1x128xf32>
    tpu.vector_store %arg6[%c2, %c0_17], %27 {strides = array<i32>} : memref<16x128xf32, #tpu.memory_space<vmem>>, vector<1x128xf32>,
    %29 = vector.extract_strided_slice %22 {offsets = [0, 384], sizes = [1, 128], strides = [1, 1]} : vector<1x2048xf32> to vector<1x128xf32>
    %c3 = arith.constant 3 : index
    %c0_18 = arith.constant 0 : index
    %30 = vector.load %arg6[%c3, %c0_18] : memref<16x128xf32, #tpu.memory_space<vmem>>, vector<1x128xf32>
    tpu.vector_store %arg6[%c3, %c0_18], %29 {strides = array<i32>} : memref<16x128xf32, #tpu.memory_space<vmem>>, vector<1x128xf32>,
    %31 = vector.extract_strided_slice %22 {offsets = [0, 512], sizes = [1, 128], strides = [1, 1]} : vector<1x2048xf32> to vector<1x128xf32>
    %c4 = arith.constant 4 : index
    %c0_19 = arith.constant 0 : index
    %32 = vector.load %arg6[%c4, %c0_19] : memref<16x128xf32, #tpu.memory_space<vmem>>, vector<1x128xf32>
    tpu.vector_store %arg6[%c4, %c0_19], %31 {strides = array<i32>} : memref<16x128xf32, #tpu.memory_space<vmem>>, vector<1x128xf32>,
    %33 = vector.extract_strided_slice %22 {offsets = [0, 640], sizes = [1, 128], strides = [1, 1]} : vector<1x2048xf32> to vector<1x128xf32>
    %c5 = arith.constant 5 : index
    %c0_20 = arith.constant 0 : index
    %34 = vector.load %arg6[%c5, %c0_20] : memref<16x128xf32, #tpu.memory_space<vmem>>, vector<1x128xf32>
    tpu.vector_store %arg6[%c5, %c0_20], %33 {strides = array<i32>} : memref<16x128xf32, #tpu.memory_space<vmem>>, vector<1x128xf32>,
    %35 = vector.extract_strided_slice %22 {offsets = [0, 768], sizes = [1, 128], strides = [1, 1]} : vector<1x2048xf32> to vector<1x128xf32>
    %c6 = arith.constant 6 : index
    %c0_21 = arith.constant 0 : index
    %36 = vector.load %arg6[%c6, %c0_21] : memref<16x128xf32, #tpu.memory_space<vmem>>, vector<1x128xf32>
    tpu.vector_store %arg6[%c6, %c0_21], %35 {strides = array<i32>} : memref<16x128xf32, #tpu.memory_space<vmem>>, vector<1x128xf32>,
    %37 = vector.extract_strided_slice %22 {offsets = [0, 896], sizes = [1, 128], strides = [1, 1]} : vector<1x2048xf32> to vector<1x128xf32>
    %c7 = arith.constant 7 : index
    %c0_22 = arith.constant 0 : index
    %38 = vector.load %arg6[%c7, %c0_22] : memref<16x128xf32, #tpu.memory_space<vmem>>, vector<1x128xf32>
    tpu.vector_store %arg6[%c7, %c0_22], %37 {strides = array<i32>} : memref<16x128xf32, #tpu.memory_space<vmem>>, vector<1x128xf32>,
    %39 = vector.extract_strided_slice %22 {offsets = [0, 1024], sizes = [1, 128], strides = [1, 1]} : vector<1x2048xf32> to vector<1x128xf32>
    %c8 = arith.constant 8 : index
    %c0_23 = arith.constant 0 : index
    %40 = vector.load %arg6[%c8, %c0_23] : memref<16x128xf32, #tpu.memory_space<vmem>>, vector<1x128xf32>
    tpu.vector_store %arg6[%c8, %c0_23], %39 {strides = array<i32>} : memref<16x128xf32, #tpu.memory_space<vmem>>, vector<1x128xf32>,
    %41 = vector.extract_strided_slice %22 {offsets = [0, 1152], sizes = [1, 128], strides = [1, 1]} : vector<1x2048xf32> to vector<1x128xf32>
    %c9 = arith.constant 9 : index
    %c0_24 = arith.constant 0 : index
    %42 = vector.load %arg6[%c9, %c0_24] : memref<16x128xf32, #tpu.memory_space<vmem>>, vector<1x128xf32>
    tpu.vector_store %arg6[%c9, %c0_24], %41 {strides = array<i32>} : memref<16x128xf32, #tpu.memory_space<vmem>>, vector<1x128xf32>,
    %43 = vector.extract_strided_slice %22 {offsets = [0, 1280], sizes = [1, 128], strides = [1, 1]} : vector<1x2048xf32> to vector<1x128xf32>
    %c10 = arith.constant 10 : index
    %c0_25 = arith.constant 0 : index
    %44 = vector.load %arg6[%c10, %c0_25] : memref<16x128xf32, #tpu.memory_space<vmem>>, vector<1x128xf32>
    tpu.vector_store %arg6[%c10, %c0_25], %43 {strides = array<i32>} : memref<16x128xf32, #tpu.memory_space<vmem>>, vector<1x128xf32>,
    %45 = vector.extract_strided_slice %22 {offsets = [0, 1408], sizes = [1, 128], strides = [1, 1]} : vector<1x2048xf32> to vector<1x128xf32>
    %c11 = arith.constant 11 : index
    %c0_26 = arith.constant 0 : index
    %46 = vector.load %arg6[%c11, %c0_26] : memref<16x128xf32, #tpu.memory_space<vmem>>, vector<1x128xf32>
    tpu.vector_store %arg6[%c11, %c0_26], %45 {strides = array<i32>} : memref<16x128xf32, #tpu.memory_space<vmem>>, vector<1x128xf32>,
    %47 = vector.extract_strided_slice %22 {offsets = [0, 1536], sizes = [1, 128], strides = [1, 1]} : vector<1x2048xf32> to vector<1x128xf32>
    %c12 = arith.constant 12 : index
    %c0_27 = arith.constant 0 : index
    %48 = vector.load %arg6[%c12, %c0_27] : memref<16x128xf32, #tpu.memory_space<vmem>>, vector<1x128xf32>
    tpu.vector_store %arg6[%c12, %c0_27], %47 {strides = array<i32>} : memref<16x128xf32, #tpu.memory_space<vmem>>, vector<1x128xf32>,
    %49 = vector.extract_strided_slice %22 {offsets = [0, 1664], sizes = [1, 128], strides = [1, 1]} : vector<1x2048xf32> to vector<1x128xf32>
    %c13 = arith.constant 13 : index
    %c0_28 = arith.constant 0 : index
    %50 = vector.load %arg6[%c13, %c0_28] : memref<16x128xf32, #tpu.memory_space<vmem>>, vector<1x128xf32>
    tpu.vector_store %arg6[%c13, %c0_28], %49 {strides = array<i32>} : memref<16x128xf32, #tpu.memory_space<vmem>>, vector<1x128xf32>,
    %51 = vector.extract_strided_slice %22 {offsets = [0, 1792], sizes = [1, 128], strides = [1, 1]} : vector<1x2048xf32> to vector<1x128xf32>
    %c14 = arith.constant 14 : index
    %c0_29 = arith.constant 0 : index
    %52 = vector.load %arg6[%c14, %c0_29] : memref<16x128xf32, #tpu.memory_space<vmem>>, vector<1x128xf32>
    tpu.vector_store %arg6[%c14, %c0_29], %51 {strides = array<i32>} : memref<16x128xf32, #tpu.memory_space<vmem>>, vector<1x128xf32>,
    %53 = vector.extract_strided_slice %22 {offsets = [0, 1920], sizes = [1, 128], strides = [1, 1]} : vector<1x2048xf32> to vector<1x128xf32>
    %c15 = arith.constant 15 : index
    %c0_30 = arith.constant 0 : index
    %54 = vector.load %arg6[%c15, %c0_30] : memref<16x128xf32, #tpu.memory_space<vmem>>, vector<1x128xf32>
    tpu.vector_store %arg6[%c15, %c0_30], %53 {strides = array<i32>} : memref<16x128xf32, #tpu.memory_space<vmem>>, vector<1x128xf32>,
    return
  }
  func.func @transform_0(%arg0: i32) -> (i32, i32) {
    %c0_i32 = arith.constant 0 : i32
    %c0_i32_0 = arith.constant 0 : i32
    return %c0_i32, %arg0 : i32, i32
  }
  func.func @transform_1(%arg0: i32) -> (i32, i32) {
    %c0_i32 = arith.constant 0 : i32
    %c0_i32_0 = arith.constant 0 : i32
    %c0_i32_1 = arith.constant 0 : i32
    return %c0_i32, %c0_i32_0 : i32, i32
  }
  func.func @transform_2(%arg0: i32) -> (i32, i32) {
    %c0_i32 = arith.constant 0 : i32
    %c0_i32_0 = arith.constant 0 : i32
    %c0_i32_1 = arith.constant 0 : i32
    return %c0_i32, %c0_i32_0 : i32, i32
  }
  func.func @transform_3(%arg0: i32) -> (i32, i32) {
    %c0_i32 = arith.constant 0 : i32
    %c0_i32_0 = arith.constant 0 : i32
    %c0_i32_1 = arith.constant 0 : i32
    return %c0_i32, %c0_i32_0 : i32, i32
  }
  func.func @transform_4(%arg0: i32) -> (i32, i32) {
    %c0_i32 = arith.constant 0 : i32
    %c0_i32_0 = arith.constant 0 : i32
    %c0_i32_1 = arith.constant 0 : i32
    return %c0_i32, %c0_i32_0 : i32, i32
  }
  func.func @transform_5(%arg0: i32) -> (i32, i32) {
    %c0_i32 = arith.constant 0 : i32
    %c0_i32_0 = arith.constant 0 : i32
    return %arg0, %c0_i32 : i32, i32
  }
}

</mosaic_0001>

<llo_original>
// kernel: tpu_custom_call.1
$region0: #{tpu_custom_call.1}
  #allocation0 [shape = 'u32[]', space=smem, size = 0x4, offset = 0x4, fixed_abs, tag = 'smem constant byte address 0x4 - core index']
  #allocation1 [shape = 'u32[144,128]{1,0:T(1,128)}', space=vmem, size = 0x12000, scoped, tag = 'internal scratch']
  #allocation2 [shape = 'f32[1,1]{1,0:T(1,128)S(6)}', space=smem, size = 0x200, scoped, tag = 'scoped memory for tpu_custom_call.1']
  %s0 = inlined_call_operand.hbm [shape: bf16[32,4096], index: 0, kind: input, shape index: {}]
  %s1 = inlined_call_operand.vmem [shape: bf16[64,32], index: 1, kind: input, shape index: {}]
  %s2 = inlined_call_operand.vmem [shape: f32[64,1], index: 2, kind: input, shape index: {}]
  %s3 = inlined_call_operand.vmem [shape: f32[64,1], index: 3, kind: input, shape index: {}]
  %s4 = inlined_call_operand.<no memory space> [shape: f32[1,1], index: 4, kind: input, shape index: {}]
  %s5 = inlined_call_operand.hbm [shape: f32[32,128], index: 5, kind: output, shape index: {}]
  %s6 = sld [smem:[#allocation0]]
  $region57: #{tpu_custom_call.1} parent=0
    _
  %s8 = ssub.s32 1, %s6
  %s9 = scalar_select 0, %s8, %s6
  %10 = sst [smem:[#allocation2]] %s4
  $region1: #{tpu_custom_call.1} parent=0
    #allocation3 [shape = 'u8[262144]{0}', space=vmem, size = 0x40000, scoped, tag = 'input window, operand 0']
    #allocation4 [shape = 's32[2]{0}', space=sflag, size = 0x8, scoped, tag = 'scoped memory for tpu_custom_call.1']
    #allocation5 [shape = 's32[2]{0}', space=sflag, size = 0x8, scoped, tag = 'scoped memory for tpu_custom_call.1']
    #allocation6 [shape = 'u8[16384]{0}', space=vmem, size = 0x4000, scoped, tag = 'output window, operand 0']
    %11 = vsyncpa [#allocation4], 0
    %s12 = scalar_lea.sflag [#allocation4], 1
    %13 = vsyncpa %s12, 0
    %14 = vsyncpa [#allocation5], 0
    %s15 = scalar_lea.sflag [#allocation5], 1
    %16 = vsyncpa %s15, 0
    loop: start=0, step=1, limit=4
    $region2: #{tpu_custom_call.1} parent=1 // loop_pre_header
      _
    $region3: #{tpu_custom_call.1} parent=1 // loop_header
      %s18 = sphi 0, %s22
      %p19 = scmp.ge.s32.totalorder %s18, 4
      %s28 = sphi 0, %s30
      %s31 = sphi 0, %s28
      %s32 = sphi 0, %s31
      %s48 = sphi 0, %s32
      %s52 = sphi 0, %s52
      %s54 = sphi 0, %s52
      %s55 = sphi 0, %s54
      %s69 = sphi 0, %s55
      %s73 = sphi 0, %s73
      %s75 = sphi 0, %s73
      %s76 = sphi 0, %s75
      %s90 = sphi 0, %s76
      %s94 = sphi 0, %s94
      %s96 = sphi 0, %s94
      %s97 = sphi 0, %s96
      %s111 = sphi 0, %s97
      %s115 = sphi 0, %s115
      %s117 = sphi 0, %s115
      %s118 = sphi 0, %s117
      %s132 = sphi 0, %s118
      %s138 = sphi 0, %s140
      %s141 = sphi 0, %s138
      %s142 = sphi 0, %s141
      %s158 = sphi 0, %s142
    $region4: #{tpu_custom_call.1} parent=1 // loop_header_branch
      %21 = sbr.rel (%p19) target = $region8
    $region5: #{tpu_custom_call.1} parent=1 // loop_body
      %s23 = ssub.s32 %s18, 1
      %s24 = ssub.s32 %s18, 2
      %s25 = sadd.s32 %s18, 1
      %s26 = ssub.s32 %s18, %s25
      %p27 = scmp.eq.s32.totalorder %s26, 0
      %s29 = sadd.s32 %s28, 1
      %s30 = scalar_select %p27, %s28, %s29
      %p33 = pneg %p27
      %p34 = scmp.eq.s32.totalorder %s18, 1
      %p35 = por %p33, %p34
      %p36 = scmp.ne.s32.totalorder %s28, %s31
      %p37 = scmp.eq.s32.totalorder %s18, 0
      %p38 = por %p36, %p37
      %p39 = scmp.ne.s32.totalorder %s28, %s31
      %p40 = scmp.eq.s32.totalorder %s23, 1
      %p41 = por %p39, %p40
      %p42 = scmp.ne.s32.totalorder %s31, %s32
      %p43 = scmp.eq.s32.totalorder %s23, 0
      %p44 = por %p42, %p43
      %p45 = scmp.ne.s32.totalorder %s31, %s32
      %p46 = scmp.eq.s32.totalorder %s24, 1
      %p47 = por %p45, %p46
      %p49 = scmp.ne.s32.totalorder %s32, %s48
      %p50 = scmp.eq.s32.totalorder %s24, 0
      %p51 = por %p49, %p50
      %s53 = sadd.s32 %s52, 1
      %p56 = scmp.eq.s32.totalorder %s18, 1
      %p57 = scmp.ne.s32.totalorder %s52, %s54
      %p58 = scmp.eq.s32.totalorder %s18, 0
      %p59 = por %p57, %p58
      %p60 = scmp.ne.s32.totalorder %s52, %s54
      %p61 = scmp.eq.s32.totalorder %s23, 1
      %p62 = por %p60, %p61
      %p63 = scmp.ne.s32.totalorder %s54, %s55
      %p64 = scmp.eq.s32.totalorder %s23, 0
      %p65 = por %p63, %p64
      %p66 = scmp.ne.s32.totalorder %s54, %s55
      %p67 = scmp.eq.s32.totalorder %s24, 1
      %p68 = por %p66, %p67
      %p70 = scmp.ne.s32.totalorder %s55, %s69
      %p71 = scmp.eq.s32.totalorder %s24, 0
      %p72 = por %p70, %p71
      %s74 = sadd.s32 %s73, 1
      %p77 = scmp.eq.s32.totalorder %s18, 1
      %p78 = scmp.ne.s32.totalorder %s73, %s75
      %p79 = scmp.eq.s32.totalorder %s18, 0
      %p80 = por %p78, %p79
      %p81 = scmp.ne.s32.totalorder %s73, %s75
      %p82 = scmp.eq.s32.totalorder %s23, 1
      %p83 = por %p81, %p82
      %p84 = scmp.ne.s32.totalorder %s75, %s76
      %p85 = scmp.eq.s32.totalorder %s23, 0
      %p86 = por %p84, %p85
      %p87 = scmp.ne.s32.totalorder %s75, %s76
      %p88 = scmp.eq.s32.totalorder %s24, 1
      %p89 = por %p87, %p88
      %p91 = scmp.ne.s32.totalorder %s76, %s90
      %p92 = scmp.eq.s32.totalorder %s24, 0
      %p93 = por %p91, %p92
      %s95 = sadd.s32 %s94, 1
      %p98 = scmp.eq.s32.totalorder %s18, 1
      %p99 = scmp.ne.s32.totalorder %s94, %s96
      %p100 = scmp.eq.s32.totalorder %s18, 0
      %p101 = por %p99, %p100
      %p102 = scmp.ne.s32.totalorder %s94, %s96
      %p103 = scmp.eq.s32.totalorder %s23, 1
      %p104 = por %p102, %p103
      %p105 = scmp.ne.s32.totalorder %s96, %s97
      %p106 = scmp.eq.s32.totalorder %s23, 0
      %p107 = por %p105, %p106
      %p108 = scmp.ne.s32.totalorder %s96, %s97
      %p109 = scmp.eq.s32.totalorder %s24, 1
      %p110 = por %p108, %p109
      %p112 = scmp.ne.s32.totalorder %s97, %s111
      %p113 = scmp.eq.s32.totalorder %s24, 0
      %p114 = por %p112, %p113
      %s116 = sadd.s32 %s115, 1
      %p119 = scmp.eq.s32.totalorder %s18, 1
      %p120 = scmp.ne.s32.totalorder %s115, %s117
      %p121 = scmp.eq.s32.totalorder %s18, 0
      %p122 = por %p120, %p121
      %p123 = scmp.ne.s32.totalorder %s115, %s117
      %p124 = scmp.eq.s32.totalorder %s23, 1
      %p125 = por %p123, %p124
      %p126 = scmp.ne.s32.totalorder %s117, %s118
      %p127 = scmp.eq.s32.totalorder %s23, 0
      %p128 = por %p126, %p127
      %p129 = scmp.ne.s32.totalorder %s117, %s118
      %p130 = scmp.eq.s32.totalorder %s24, 1
      %p131 = por %p129, %p130
      %p133 = scmp.ne.s32.totalorder %s118, %s132
      %p134 = scmp.eq.s32.totalorder %s24, 0
      %p135 = por %p133, %p134
      %s136 = ssub.s32 %s18, %s25
      %p137 = scmp.eq.s32.totalorder %s136, 0
      %s139 = sadd.s32 %s138, 1
      %s140 = scalar_select %p137, %s138, %s139
      %p143 = pneg %p137
      %p144 = scmp.eq.s32.totalorder %s18, 1
      %p145 = por %p143, %p144
      %p146 = scmp.ne.s32.totalorder %s138, %s141
      %p147 = scmp.eq.s32.totalorder %s18, 0
      %p148 = por %p146, %p147
      %p149 = scmp.ne.s32.totalorder %s138, %s141
      %p150 = scmp.eq.s32.totalorder %s23, 1
      %p151 = por %p149, %p150
      %p152 = scmp.ne.s32.totalorder %s141, %s142
      %p153 = scmp.eq.s32.totalorder %s23, 0
      %p154 = por %p152, %p153
      %p155 = scmp.ne.s32.totalorder %s141, %s142
      %p156 = scmp.eq.s32.totalorder %s24, 1
      %p157 = por %p155, %p156
      %p159 = scmp.ne.s32.totalorder %s142, %s158
      %p160 = scmp.eq.s32.totalorder %s24, 0
      %p161 = por %p159, %p160
      %p162 = scmp.le.s32.totalorder 1, %s18
      %p163 = scmp.lt.s32.totalorder %s18, 3
      %p164 = pnand %p162, %p163
      %p165 = pneg %p164
      // Predicated region
      $region9: #{tpu_custom_call.1} parent=5 // pred_check
        _
      $region10: #{tpu_custom_call.1} parent=5 // pred_check_branch
        %167 = sbr.rel (%p164) target = $region12
      $region11: #{tpu_custom_call.1} parent=5 // pred_region
        %s168 = ssub.s32 %s18, 1
        // Predicated region
        $region13: #{tpu_custom_call.1} parent=11 // pred_check
          %p169 = pneg %p65
        $region14: #{tpu_custom_call.1} parent=11 // pred_check_branch
          %171 = sbr.rel (%p169) target = $region16
        $region15: #{tpu_custom_call.1} parent=11 // pred_region
          _
        $region16: #{tpu_custom_call.1} parent=11 // pred_fallthru
          _
        // Predicated region
        $region17: #{tpu_custom_call.1} parent=11 // pred_check
          %p172 = pneg %p86
        $region18: #{tpu_custom_call.1} parent=11 // pred_check_branch
          %174 = sbr.rel (%p172) target = $region20
        $region19: #{tpu_custom_call.1} parent=11 // pred_region
          _
        $region20: #{tpu_custom_call.1} parent=11 // pred_fallthru
          _
        // Predicated region
        $region21: #{tpu_custom_call.1} parent=11 // pred_check
          %p175 = pneg %p107
        $region22: #{tpu_custom_call.1} parent=11 // pred_check_branch
          %177 = sbr.rel (%p175) target = $region24
        $region23: #{tpu_custom_call.1} parent=11 // pred_region
          _
        $region24: #{tpu_custom_call.1} parent=11 // pred_fallthru
          _
        // Predicated region
        $region25: #{tpu_custom_call.1} parent=11 // pred_check
          %p178 = pneg %p128
        $region26: #{tpu_custom_call.1} parent=11 // pred_check_branch
          %180 = sbr.rel (%p178) target = $region28
        $region27: #{tpu_custom_call.1} parent=11 // pred_region
          _
        $region28: #{tpu_custom_call.1} parent=11 // pred_fallthru
          _
      $region12: #{tpu_custom_call.1} parent=5 // pred_fallthru
        _
      %p181 = scmp.lt.s32.totalorder %s18, 2
      // Predicated region
      $region29: #{tpu_custom_call.1} parent=5 // pred_check
        %p182 = pneg %p181
      $region30: #{tpu_custom_call.1} parent=5 // pred_check_branch
        %184 = sbr.rel (%p182) target = $region32
      $region31: #{tpu_custom_call.1} parent=5 // pred_region
        // Predicated region
        $region33: #{tpu_custom_call.1} parent=31 // pred_check
          %p185 = pneg %p38
        $region34: #{tpu_custom_call.1} parent=31 // pred_check_branch
          %187 = sbr.rel (%p185) target = $region36
        $region35: #{tpu_custom_call.1} parent=31 // pred_region
          %s188 = sand.u32 %s28, 1
          %s189 = scalar_lea.sflag [#allocation4], %s188
          %s190 = sand.u32 %s28, 1
          %s191 = smul.addr %s190, 256
          %s192 = scalar_lea.vmem [#allocation3], %s191
          %s193 = smul.u32 16, %s18
          %s195 = ssub.s32 4096, 4096
          %196 = vsyncadd %s189, %s195
          %s197 = smul.addr %s193, 64
          %s198 = scalar_lea.hbm %s0, %s197
          %s199 = sshll.u32 %s192, 4
          %s200 = int_to_ptr.vmem [resolvable:$true] %s199
          %205 = dma.hbm_to_vmem [thread:$0]  %s198, 4096, %s200, %s189, 2048, 1024, 64
        $region36: #{tpu_custom_call.1} parent=31 // pred_fallthru
          _
      $region32: #{tpu_custom_call.1} parent=5 // pred_fallthru
        _
      %p206 = scmp.le.s32.totalorder 1, %s18
      %p207 = scmp.lt.s32.totalorder %s18, 3
      %p208 = pnand %p206, %p207
      %p209 = pneg %p208
      // Predicated region
      $region37: #{tpu_custom_call.1} parent=5 // pred_check
        _
      $region38: #{tpu_custom_call.1} parent=5 // pred_check_branch
        %211 = sbr.rel (%p208) target = $region40
      $region39: #{tpu_custom_call.1} parent=5 // pred_region
        %s212 = ssub.s32 %s18, 1
        %s213 = sand.u32 %s31, 1
        %s214 = scalar_lea.sflag [#allocation4], %s213
        %s215 = sand.u32 %s31, 1
        %s216 = smul.addr %s215, 256
        %s217 = scalar_lea.vmem [#allocation3], %s216
        // Predicated region
        $region41: #{tpu_custom_call.1} parent=39 // pred_check
          %p218 = pneg %p44
        $region42: #{tpu_custom_call.1} parent=39 // pred_check_branch
          %220 = sbr.rel (%p218) target = $region44
        $region43: #{tpu_custom_call.1} parent=39 // pred_region
          %221 = dma.done %s214, 4096
        $region44: #{tpu_custom_call.1} parent=39 // pred_fallthru
          _
        %s222 = sand.u32 %s31, 1
        %s223 = scalar_lea.sflag [#allocation4], %s222
        %s224 = sand.u32 %s31, 1
        %s225 = smul.addr %s224, 256
        %s226 = scalar_lea.vmem [#allocation3], %s225
        %p227 = pneg %p44
        %p228 = pneg %p41
        %p229 = pneg %p65
        %p230 = pneg %p62
        %p231 = pneg %p86
        %p232 = pneg %p83
        %p233 = pneg %p107
        %p234 = pneg %p104
        %p235 = pneg %p128
        %p236 = pneg %p125
        %p237 = pneg %p154
        %p238 = pneg %p151
        %s239 = sand.u32 %s141, 1
        %s240 = scalar_lea.sflag [#allocation5], %s239
        %s241 = sand.u32 %s141, 1
        %s242 = smul.addr %s241, 16
        %s243 = scalar_lea.vmem [#allocation6], %s242
        %s244 = smul.u32 16, %s23
        %s245 = smul.u32 2, %s23
        %v247 = vld [vmem:[%s1] sm:$0xf]
        %v248 = vld [vmem:[%s1 + $0x4] sm:$0xf]
        %v249 = vld [vmem:[%s1 + $0x8] sm:$0xf]
        %v250 = vld [vmem:[%s1 + $0xc] sm:$0xf]
        %v251 = vld [vmem:[%s1 + $0x10] sm:$0xf]
        %v252 = vld [vmem:[%s1 + $0x14] sm:$0xf]
        %v253 = vld [vmem:[%s1 + $0x18] sm:$0xf]
        %v254 = vld [vmem:[%s1 + $0x1c] sm:$0xf]
        %v255 = vld [vmem:[%s217] sm:$0xff]
        %v256 = vld [vmem:[%s217 + $0x8] sm:$0xff]
        %v257 = vld [vmem:[%s217 + $0x10] sm:$0xff]
        %v258 = vld [vmem:[%s217 + $0x18] sm:$0xff]
        %v259 = vld [vmem:[%s217 + $0x20] sm:$0xff]
        %v260 = vld [vmem:[%s217 + $0x28] sm:$0xff]
        %v261 = vld [vmem:[%s217 + $0x30] sm:$0xff]
        %v262 = vld [vmem:[%s217 + $0x38] sm:$0xff]
        %v263 = vld [vmem:[%s217 + $0x40] sm:$0xff]
        %v264 = vld [vmem:[%s217 + $0x48] sm:$0xff]
        %v265 = vld [vmem:[%s217 + $0x50] sm:$0xff]
        %v266 = vld [vmem:[%s217 + $0x58] sm:$0xff]
        %v267 = vld [vmem:[%s217 + $0x60] sm:$0xff]
        %v268 = vld [vmem:[%s217 + $0x68] sm:$0xff]
        %v269 = vld [vmem:[%s217 + $0x70] sm:$0xff]
        %v270 = vld [vmem:[%s217 + $0x78] sm:$0xff]
        %v271 = vld [vmem:[%s217 + $0x80] sm:$0xff]
        %v272 = vld [vmem:[%s217 + $0x88] sm:$0xff]
        %v273 = vld [vmem:[%s217 + $0x90] sm:$0xff]
        %v274 = vld [vmem:[%s217 + $0x98] sm:$0xff]
        %v275 = vld [vmem:[%s217 + $0xa0] sm:$0xff]
        %v276 = vld [vmem:[%s217 + $0xa8] sm:$0xff]
        %v277 = vld [vmem:[%s217 + $0xb0] sm:$0xff]
        %v278 = vld [vmem:[%s217 + $0xb8] sm:$0xff]
        %v279 = vld [vmem:[%s217 + $0xc0] sm:$0xff]
        %v280 = vld [vmem:[%s217 + $0xc8] sm:$0xff]
        %v281 = vld [vmem:[%s217 + $0xd0] sm:$0xff]
        %v282 = vld [vmem:[%s217 + $0xd8] sm:$0xff]
        %v283 = vld [vmem:[%s217 + $0xe0] sm:$0xff]
        %v284 = vld [vmem:[%s217 + $0xe8] sm:$0xff]
        %v285 = vld [vmem:[%s217 + $0xf0] sm:$0xff]
        %v286 = vld [vmem:[%s217 + $0xf8] sm:$0xff]
        %v287 = vld [vmem:[%s2] sm:$0xff]
        %v288 = vld [vmem:[%s2 + $0x8] sm:$0xff]
        %v289 = vld [vmem:[%s2 + $0x10] sm:$0xff]
        %v290 = vld [vmem:[%s2 + $0x18] sm:$0xff]
        %v291 = vld [vmem:[%s2 + $0x20] sm:$0xff]
        %v292 = vld [vmem:[%s2 + $0x28] sm:$0xff]
        %v293 = vld [vmem:[%s2 + $0x30] sm:$0xff]
        %v294 = vld [vmem:[%s2 + $0x38] sm:$0xff]
        %296 = vset.pattern.permute.xlu0 0
        %297 = vperm.xlu0 %296, %v287
        %v298 = vpop.permute.xlu0 %297
        %301 = vset.pattern.permute.xlu0 0
        %302 = vperm.xlu0 %301, %v288
        %v303 = vpop.permute.xlu0 %302
        %306 = vset.pattern.permute.xlu0 0
        %307 = vperm.xlu0 %306, %v289
        %v308 = vpop.permute.xlu0 %307
        %311 = vset.pattern.permute.xlu0 0
        %312 = vperm.xlu0 %311, %v290
        %v313 = vpop.permute.xlu0 %312
        %316 = vset.pattern.permute.xlu0 0
        %317 = vperm.xlu0 %316, %v291
        %v318 = vpop.permute.xlu0 %317
        %321 = vset.pattern.permute.xlu0 0
        %322 = vperm.xlu0 %321, %v292
        %v323 = vpop.permute.xlu0 %322
        %326 = vset.pattern.permute.xlu0 0
        %327 = vperm.xlu0 %326, %v293
        %v328 = vpop.permute.xlu0 %327
        %331 = vset.pattern.permute.xlu0 0
        %332 = vperm.xlu0 %331, %v294
        %v333 = vpop.permute.xlu0 %332
        %v343 = vunpack.c.l.b16 %v247
        %v344 = vunpack.c.l.b16 %v248
        %v345 = vunpack.c.l.b16 %v249
        %v346 = vunpack.c.l.b16 %v250
        %v347 = vunpack.c.l.b16 %v251
        %v348 = vunpack.c.l.b16 %v252
        %v349 = vunpack.c.l.b16 %v253
        %v350 = vunpack.c.l.b16 %v254
        %v351 = vpack.c.b16 %v344, %v343
        %v352 = vpack.c.b16 %v346, %v345
        %v353 = vpack.c.b16 %v348, %v347
        %v354 = vpack.c.b16 %v350, %v349
        %v387 = vunpack.c.l.b16 %v255
        %v388 = vunpack.c.h.b16 %v255
        %v389 = vunpack.c.l.b16 %v256
        %v390 = vunpack.c.h.b16 %v256
        %v391 = vunpack.c.l.b16 %v257
        %v392 = vunpack.c.h.b16 %v257
        %v393 = vunpack.c.l.b16 %v258
        %v394 = vunpack.c.h.b16 %v258
        %v395 = vunpack.c.l.b16 %v259
        %v396 = vunpack.c.h.b16 %v259
        %v397 = vunpack.c.l.b16 %v260
        %v398 = vunpack.c.h.b16 %v260
        %v399 = vunpack.c.l.b16 %v261
        %v400 = vunpack.c.h.b16 %v261
        %v401 = vunpack.c.l.b16 %v262
        %v402 = vunpack.c.h.b16 %v262
        %v403 = vunpack.c.l.b16 %v263
        %v404 = vunpack.c.h.b16 %v263
        %v405 = vunpack.c.l.b16 %v264
        %v406 = vunpack.c.h.b16 %v264
        %v407 = vunpack.c.l.b16 %v265
        %v408 = vunpack.c.h.b16 %v265
        %v409 = vunpack.c.l.b16 %v266
        %v410 = vunpack.c.h.b16 %v266
        %v411 = vunpack.c.l.b16 %v267
        %v412 = vunpack.c.h.b16 %v267
        %v413 = vunpack.c.l.b16 %v268
        %v414 = vunpack.c.h.b16 %v268
        %v415 = vunpack.c.l.b16 %v269
        %v416 = vunpack.c.h.b16 %v269
        %v417 = vunpack.c.l.b16 %v270
        %v418 = vunpack.c.h.b16 %v270
        %v419 = vunpack.c.l.b16 %v271
        %v420 = vunpack.c.h.b16 %v271
        %v421 = vunpack.c.l.b16 %v272
        %v422 = vunpack.c.h.b16 %v272
        %v423 = vunpack.c.l.b16 %v273
        %v424 = vunpack.c.h.b16 %v273
        %v425 = vunpack.c.l.b16 %v274
        %v426 = vunpack.c.h.b16 %v274
        %v427 = vunpack.c.l.b16 %v275
        %v428 = vunpack.c.h.b16 %v275
        %v429 = vunpack.c.l.b16 %v276
        %v430 = vunpack.c.h.b16 %v276
        %v431 = vunpack.c.l.b16 %v277
        %v432 = vunpack.c.h.b16 %v277
        %v433 = vunpack.c.l.b16 %v278
        %v434 = vunpack.c.h.b16 %v278
        %v435 = vunpack.c.l.b16 %v279
        %v436 = vunpack.c.h.b16 %v279
        %v437 = vunpack.c.l.b16 %v280
        %v438 = vunpack.c.h.b16 %v280
        %v439 = vunpack.c.l.b16 %v281
        %v440 = vunpack.c.h.b16 %v281
        %v441 = vunpack.c.l.b16 %v282
        %v442 = vunpack.c.h.b16 %v282
        %v443 = vunpack.c.l.b16 %v283
        %v444 = vunpack.c.h.b16 %v283
        %v445 = vunpack.c.l.b16 %v284
        %v446 = vunpack.c.h.b16 %v284
        %v447 = vunpack.c.l.b16 %v285
        %v448 = vunpack.c.h.b16 %v285
        %v449 = vunpack.c.l.b16 %v286
        %v450 = vunpack.c.h.b16 %v286
        %v451 = vpack.c.b16 %v403, %v387
        %v452 = vpack.c.b16 %v404, %v388
        %v453 = vpack.c.b16 %v405, %v389
        %v454 = vpack.c.b16 %v406, %v390
        %v455 = vpack.c.b16 %v407, %v391
        %v456 = vpack.c.b16 %v408, %v392
        %v457 = vpack.c.b16 %v409, %v393
        %v458 = vpack.c.b16 %v410, %v394
        %v459 = vpack.c.b16 %v411, %v395
        %v460 = vpack.c.b16 %v412, %v396
        %v461 = vpack.c.b16 %v413, %v397
        %v462 = vpack.c.b16 %v414, %v398
        %v463 = vpack.c.b16 %v415, %v399
        %v464 = vpack.c.b16 %v416, %v400
        %v465 = vpack.c.b16 %v417, %v401
        %v466 = vpack.c.b16 %v418, %v402
        %v467 = vpack.c.b16 %v435, %v419
        %v468 = vpack.c.b16 %v436, %v420
        %v469 = vpack.c.b16 %v437, %v421
        %v470 = vpack.c.b16 %v438, %v422
        %v471 = vpack.c.b16 %v439, %v423
        %v472 = vpack.c.b16 %v440, %v424
        %v473 = vpack.c.b16 %v441, %v425
        %v474 = vpack.c.b16 %v442, %v426
        %v475 = vpack.c.b16 %v443, %v427
        %v476 = vpack.c.b16 %v444, %v428
        %v477 = vpack.c.b16 %v445, %v429
        %v478 = vpack.c.b16 %v446, %v430
        %v479 = vpack.c.b16 %v447, %v431
        %v480 = vpack.c.b16 %v448, %v432
        %v481 = vpack.c.b16 %v449, %v433
        %v482 = vpack.c.b16 %v450, %v434
        %vm515 = vcmask 261120
        %v517 = vsel %vm515, %v351, 0
        %v520 = vsel %vm515, %v352, 0
        %v523 = vsel %vm515, %v353, 0
        %v526 = vsel %vm515, %v354, 0
        %528 = vmatprep.subr.bf16.mxu0 0
        %529 = vmatpush1.bf16.msra.mxu0 0
        %530 = vmatprep.subr.bf16.mxu0 0
        %531 = vmatpush1.bf16.msra.mxu0 0
        %532 = vmatprep.subr.bf16.mxu0 0
        %533 = vmatpush1.bf16.msra.mxu0 0
        %534 = vmatprep.subr.bf16.mxu0 0
        %535 = vmatpush1.bf16.msra.mxu0 0
        %536 = vmatprep.subr.bf16.mxu0 0
        %537 = vmatpush1.bf16.msra.mxu0 0
        %538 = vmatprep.subr.bf16.mxu0 0
        %539 = vmatpush1.bf16.msra.mxu0 0
        %540 = vmatprep.subr.bf16.mxu0 %v468
        %541 = vmatpush1.bf16.msra.mxu0 %v467
        %542 = vmatprep.subr.bf16.mxu0 %v452
        %543 = vmatpush1.bf16.msra.mxu0 %v451
        %544 = vmatprep.subr.bf16.mxu0 0
        %545 = vmatpush2.bf16.msra.mxu0 0
        %546 = vmatprep.subr.bf16.mxu0 0
        %547 = vmatpush2.bf16.msra.mxu0 0
        %548 = vmatprep.subr.bf16.mxu0 0
        %549 = vmatpush2.bf16.msra.mxu0 0
        %550 = vmatprep.subr.bf16.mxu0 0
        %551 = vmatpush2.bf16.msra.mxu0 0
        %552 = vmatprep.subr.bf16.mxu0 0
        %553 = vmatpush2.bf16.msra.mxu0 0
        %554 = vmatprep.subr.bf16.mxu0 0
        %555 = vmatpush2.bf16.msra.mxu0 0
        %556 = vmatprep.subr.bf16.mxu0 0
        %557 = vmatpush2.bf16.msra.mxu0 0
        %558 = vmatprep.subr.bf16.mxu0 0
        %559 = vmatpush2.bf16.msra.mxu0 0
        %560 = vmatprep.mubr.bf16.mxu0 0
        %561 = vmatmul.mubr.bf16.gmra.mxu0 %v517
        %v562 = vpop.f32.mrf.mxu0
        %v563 = vadd.f32 %v298, %v562
        %v564 = vpop.f32.mrf.mxu0
        %v565 = vadd.f32 %v298, %v564
        %v566 = vpop.f32.mrf.mxu0
        %v567 = vadd.f32 %v303, %v566
        %v568 = vpop.f32.mrf.mxu0
        %v569 = vadd.f32 %v303, %v568
        %570 = vmatprep.mubr.bf16.mxu0 0
        %571 = vmatmul.mubr.bf16.gmra.mxu0 %v520
        %v572 = vpop.f32.mrf.mxu0
        %v573 = vadd.f32 %v308, %v572
        %v574 = vpop.f32.mrf.mxu0
        %v575 = vadd.f32 %v308, %v574
        %v576 = vpop.f32.mrf.mxu0
        %v577 = vadd.f32 %v313, %v576
        %v578 = vpop.f32.mrf.mxu0
        %v579 = vadd.f32 %v313, %v578
        %580 = vmatprep.mubr.bf16.mxu0 0
        %581 = vmatmul.mubr.bf16.gmra.mxu0 %v523
        %v582 = vpop.f32.mrf.mxu0
        %v583 = vadd.f32 %v318, %v582
        %v584 = vpop.f32.mrf.mxu0
        %v585 = vadd.f32 %v318, %v584
        %v586 = vpop.f32.mrf.mxu0
        %v587 = vadd.f32 %v323, %v586
        %v588 = vpop.f32.mrf.mxu0
        %v589 = vadd.f32 %v323, %v588
        %590 = vmatprep.mubr.bf16.mxu0 0
        %591 = vmatmul.mubr.bf16.gmra.mxu0 %v526
        %v592 = vpop.f32.mrf.mxu0
        %v593 = vadd.f32 %v328, %v592
        %v594 = vpop.f32.mrf.mxu0
        %v595 = vadd.f32 %v328, %v594
        %v596 = vpop.f32.mrf.mxu0
        %v597 = vadd.f32 %v333, %v596
        %v598 = vpop.f32.mrf.mxu0
        %v599 = vadd.f32 %v333, %v598
        %600 = vdwg.mxu0
        %601 = vmatprep.subr.bf16.mxu0 0
        %602 = vmatpush1.bf16.msra.mxu0 0
        %603 = vmatprep.subr.bf16.mxu0 0
        %604 = vmatpush1.bf16.msra.mxu0 0
        %605 = vmatprep.subr.bf16.mxu0 0
        %606 = vmatpush1.bf16.msra.mxu0 0
        %607 = vmatprep.subr.bf16.mxu0 0
        %608 = vmatpush1.bf16.msra.mxu0 0
        %609 = vmatprep.subr.bf16.mxu0 0
        %610 = vmatpush1.bf16.msra.mxu0 0
        %611 = vmatprep.subr.bf16.mxu0 0
        %612 = vmatpush1.bf16.msra.mxu0 0
        %613 = vmatprep.subr.bf16.mxu0 %v470
        %614 = vmatpush1.bf16.msra.mxu0 %v469
        %615 = vmatprep.subr.bf16.mxu0 %v454
        %616 = vmatpush1.bf16.msra.mxu0 %v453
        %617 = vmatprep.subr.bf16.mxu0 0
        %618 = vmatpush2.bf16.msra.mxu0 0
        %619 = vmatprep.subr.bf16.mxu0 0
        %620 = vmatpush2.bf16.msra.mxu0 0
        %621 = vmatprep.subr.bf16.mxu0 0
        %622 = vmatpush2.bf16.msra.mxu0 0
        %623 = vmatprep.subr.bf16.mxu0 0
        %624 = vmatpush2.bf16.msra.mxu0 0
        %625 = vmatprep.subr.bf16.mxu0 0
        %626 = vmatpush2.bf16.msra.mxu0 0
        %627 = vmatprep.subr.bf16.mxu0 0
        %628 = vmatpush2.bf16.msra.mxu0 0
        %629 = vmatprep.subr.bf16.mxu0 0
        %630 = vmatpush2.bf16.msra.mxu0 0
        %631 = vmatprep.subr.bf16.mxu0 0
        %632 = vmatpush2.bf16.msra.mxu0 0
        %633 = vmatprep.mubr.bf16.mxu0 0
        %634 = vmatmul.mubr.bf16.gmra.mxu0 %v517
        %v635 = vpop.f32.mrf.mxu0
        %v636 = vadd.f32 %v298, %v635
        %v637 = vpop.f32.mrf.mxu0
        %v638 = vadd.f32 %v298, %v637
        %v639 = vpop.f32.mrf.mxu0
        %v640 = vadd.f32 %v303, %v639
        %v641 = vpop.f32.mrf.mxu0
        %v642 = vadd.f32 %v303, %v641
        %643 = vmatprep.mubr.bf16.mxu0 0
        %644 = vmatmul.mubr.bf16.gmra.mxu0 %v520
        %v645 = vpop.f32.mrf.mxu0
        %v646 = vadd.f32 %v308, %v645
        %v647 = vpop.f32.mrf.mxu0
        %v648 = vadd.f32 %v308, %v647
        %v649 = vpop.f32.mrf.mxu0
        %v650 = vadd.f32 %v313, %v649
        %v651 = vpop.f32.mrf.mxu0
        %v652 = vadd.f32 %v313, %v651
        %653 = vmatprep.mubr.bf16.mxu0 0
        %654 = vmatmul.mubr.bf16.gmra.mxu0 %v523
        %v655 = vpop.f32.mrf.mxu0
        %v656 = vadd.f32 %v318, %v655
        %v657 = vpop.f32.mrf.mxu0
        %v658 = vadd.f32 %v318, %v657
        %v659 = vpop.f32.mrf.mxu0
        %v660 = vadd.f32 %v323, %v659
        %v661 = vpop.f32.mrf.mxu0
        %v662 = vadd.f32 %v323, %v661
        %663 = vmatprep.mubr.bf16.mxu0 0
        %664 = vmatmul.mubr.bf16.gmra.mxu0 %v526
        %v665 = vpop.f32.mrf.mxu0
        %v666 = vadd.f32 %v328, %v665
        %v667 = vpop.f32.mrf.mxu0
        %v668 = vadd.f32 %v328, %v667
        %v669 = vpop.f32.mrf.mxu0
        %v670 = vadd.f32 %v333, %v669
        %v671 = vpop.f32.mrf.mxu0
        %v672 = vadd.f32 %v333, %v671
        %673 = vdwg.mxu0
        %674 = vmatprep.subr.bf16.mxu0 0
        %675 = vmatpush1.bf16.msra.mxu0 0
        %676 = vmatprep.subr.bf16.mxu0 0
        %677 = vmatpush1.bf16.msra.mxu0 0
        %678 = vmatprep.subr.bf16.mxu0 0
        %679 = vmatpush1.bf16.msra.mxu0 0
        %680 = vmatprep.subr.bf16.mxu0 0
        %681 = vmatpush1.bf16.msra.mxu0 0
        %682 = vmatprep.subr.bf16.mxu0 0
        %683 = vmatpush1.bf16.msra.mxu0 0
        %684 = vmatprep.subr.bf16.mxu0 0
        %685 = vmatpush1.bf16.msra.mxu0 0
        %686 = vmatprep.subr.bf16.mxu0 %v472
        %687 = vmatpush1.bf16.msra.mxu0 %v471
        %688 = vmatprep.subr.bf16.mxu0 %v456
        %689 = vmatpush1.bf16.msra.mxu0 %v455
        %690 = vmatprep.subr.bf16.mxu0 0
        %691 = vmatpush2.bf16.msra.mxu0 0
        %692 = vmatprep.subr.bf16.mxu0 0
        %693 = vmatpush2.bf16.msra.mxu0 0
        %694 = vmatprep.subr.bf16.mxu0 0
        %695 = vmatpush2.bf16.msra.mxu0 0
        %696 = vmatprep.subr.bf16.mxu0 0
        %697 = vmatpush2.bf16.msra.mxu0 0
        %698 = vmatprep.subr.bf16.mxu0 0
        %699 = vmatpush2.bf16.msra.mxu0 0
        %700 = vmatprep.subr.bf16.mxu0 0
        %701 = vmatpush2.bf16.msra.mxu0 0
        %702 = vmatprep.subr.bf16.mxu0 0
        %703 = vmatpush2.bf16.msra.mxu0 0
        %704 = vmatprep.subr.bf16.mxu0 0
        %705 = vmatpush2.bf16.msra.mxu0 0
        %706 = vmatprep.mubr.bf16.mxu0 0
        %707 = vmatmul.mubr.bf16.gmra.mxu0 %v517
        %v708 = vpop.f32.mrf.mxu0
        %v709 = vadd.f32 %v298, %v708
        %v710 = vpop.f32.mrf.mxu0
        %v711 = vadd.f32 %v298, %v710
        %v712 = vpop.f32.mrf.mxu0
        %v713 = vadd.f32 %v303, %v712
        %v714 = vpop.f32.mrf.mxu0
        %v715 = vadd.f32 %v303, %v714
        %716 = vmatprep.mubr.bf16.mxu0 0
        %717 = vmatmul.mubr.bf16.gmra.mxu0 %v520
        %v718 = vpop.f32.mrf.mxu0
        %v719 = vadd.f32 %v308, %v718
        %v720 = vpop.f32.mrf.mxu0
        %v721 = vadd.f32 %v308, %v720
        %v722 = vpop.f32.mrf.mxu0
        %v723 = vadd.f32 %v313, %v722
        %v724 = vpop.f32.mrf.mxu0
        %v725 = vadd.f32 %v313, %v724
        %726 = vmatprep.mubr.bf16.mxu0 0
        %727 = vmatmul.mubr.bf16.gmra.mxu0 %v523
        %v728 = vpop.f32.mrf.mxu0
        %v729 = vadd.f32 %v318, %v728
        %v730 = vpop.f32.mrf.mxu0
        %v731 = vadd.f32 %v318, %v730
        %v732 = vpop.f32.mrf.mxu0
        %v733 = vadd.f32 %v323, %v732
        %v734 = vpop.f32.mrf.mxu0
        %v735 = vadd.f32 %v323, %v734
        %736 = vmatprep.mubr.bf16.mxu0 0
        %737 = vmatmul.mubr.bf16.gmra.mxu0 %v526
        %v738 = vpop.f32.mrf.mxu0
        %v739 = vadd.f32 %v328, %v738
        %v740 = vpop.f32.mrf.mxu0
        %v741 = vadd.f32 %v328, %v740
        %v742 = vpop.f32.mrf.mxu0
        %v743 = vadd.f32 %v333, %v742
        %v744 = vpop.f32.mrf.mxu0
        %v745 = vadd.f32 %v333, %v744
        %746 = vdwg.mxu0
        %747 = vmatprep.subr.bf16.mxu0 0
        %748 = vmatpush1.bf16.msra.mxu0 0
        %749 = vmatprep.subr.bf16.mxu0 0
        %750 = vmatpush1.bf16.msra.mxu0 0
        %751 = vmatprep.subr.bf16.mxu0 0
        %752 = vmatpush1.bf16.msra.mxu0 0
        %753 = vmatprep.subr.bf16.mxu0 0
        %754 = vmatpush1.bf16.msra.mxu0 0
        %755 = vmatprep.subr.bf16.mxu0 0
        %756 = vmatpush1.bf16.msra.mxu0 0
        %757 = vmatprep.subr.bf16.mxu0 0
        %758 = vmatpush1.bf16.msra.mxu0 0
        %759 = vmatprep.subr.bf16.mxu0 %v474
        %760 = vmatpush1.bf16.msra.mxu0 %v473
        %761 = vmatprep.subr.bf16.mxu0 %v458
        %762 = vmatpush1.bf16.msra.mxu0 %v457
        %763 = vmatprep.subr.bf16.mxu0 0
        %764 = vmatpush2.bf16.msra.mxu0 0
        %765 = vmatprep.subr.bf16.mxu0 0
        %766 = vmatpush2.bf16.msra.mxu0 0
        %767 = vmatprep.subr.bf16.mxu0 0
        %768 = vmatpush2.bf16.msra.mxu0 0
        %769 = vmatprep.subr.bf16.mxu0 0
        %770 = vmatpush2.bf16.msra.mxu0 0
        %771 = vmatprep.subr.bf16.mxu0 0
        %772 = vmatpush2.bf16.msra.mxu0 0
        %773 = vmatprep.subr.bf16.mxu0 0
        %774 = vmatpush2.bf16.msra.mxu0 0
        %775 = vmatprep.subr.bf16.mxu0 0
        %776 = vmatpush2.bf16.msra.mxu0 0
        %777 = vmatprep.subr.bf16.mxu0 0
        %778 = vmatpush2.bf16.msra.mxu0 0
        %779 = vmatprep.mubr.bf16.mxu0 0
        %780 = vmatmul.mubr.bf16.gmra.mxu0 %v517
        %v781 = vpop.f32.mrf.mxu0
        %v782 = vadd.f32 %v298, %v781
        %v783 = vpop.f32.mrf.mxu0
        %v784 = vadd.f32 %v298, %v783
        %v785 = vpop.f32.mrf.mxu0
        %v786 = vadd.f32 %v303, %v785
        %v787 = vpop.f32.mrf.mxu0
        %v788 = vadd.f32 %v303, %v787
        %789 = vmatprep.mubr.bf16.mxu0 0
        %790 = vmatmul.mubr.bf16.gmra.mxu0 %v520
        %v791 = vpop.f32.mrf.mxu0
        %v792 = vadd.f32 %v308, %v791
        %v793 = vpop.f32.mrf.mxu0
        %v794 = vadd.f32 %v308, %v793
        %v795 = vpop.f32.mrf.mxu0
        %v796 = vadd.f32 %v313, %v795
        %v797 = vpop.f32.mrf.mxu0
        %v798 = vadd.f32 %v313, %v797
        %799 = vmatprep.mubr.bf16.mxu0 0
        %800 = vmatmul.mubr.bf16.gmra.mxu0 %v523
        %v801 = vpop.f32.mrf.mxu0
        %v802 = vadd.f32 %v318, %v801
        %v803 = vpop.f32.mrf.mxu0
        %v804 = vadd.f32 %v318, %v803
        %v805 = vpop.f32.mrf.mxu0
        %v806 = vadd.f32 %v323, %v805
        %v807 = vpop.f32.mrf.mxu0
        %v808 = vadd.f32 %v323, %v807
        %809 = vmatprep.mubr.bf16.mxu0 0
        %810 = vmatmul.mubr.bf16.gmra.mxu0 %v526
        %v811 = vpop.f32.mrf.mxu0
        %v812 = vadd.f32 %v328, %v811
        %v813 = vpop.f32.mrf.mxu0
        %v814 = vadd.f32 %v328, %v813
        %v815 = vpop.f32.mrf.mxu0
        %v816 = vadd.f32 %v333, %v815
        %v817 = vpop.f32.mrf.mxu0
        %v818 = vadd.f32 %v333, %v817
        %819 = vdwg.mxu0
        %820 = vmatprep.subr.bf16.mxu0 0
        %821 = vmatpush1.bf16.msra.mxu0 0
        %822 = vmatprep.subr.bf16.mxu0 0
        %823 = vmatpush1.bf16.msra.mxu0 0
        %824 = vmatprep.subr.bf16.mxu0 0
        %825 = vmatpush1.bf16.msra.mxu0 0
        %826 = vmatprep.subr.bf16.mxu0 0
        %827 = vmatpush1.bf16.msra.mxu0 0
        %828 = vmatprep.subr.bf16.mxu0 0
        %829 = vmatpush1.bf16.msra.mxu0 0
        %830 = vmatprep.subr.bf16.mxu0 0
        %831 = vmatpush1.bf16.msra.mxu0 0
        %832 = vmatprep.subr.bf16.mxu0 %v476
        %833 = vmatpush1.bf16.msra.mxu0 %v475
        %834 = vmatprep.subr.bf16.mxu0 %v460
        %835 = vmatpush1.bf16.msra.mxu0 %v459
        %836 = vmatprep.subr.bf16.mxu0 0
        %837 = vmatpush2.bf16.msra.mxu0 0
        %838 = vmatprep.subr.bf16.mxu0 0
        %839 = vmatpush2.bf16.msra.mxu0 0
        %840 = vmatprep.subr.bf16.mxu0 0
        %841 = vmatpush2.bf16.msra.mxu0 0
        %842 = vmatprep.subr.bf16.mxu0 0
        %843 = vmatpush2.bf16.msra.mxu0 0
        %844 = vmatprep.subr.bf16.mxu0 0
        %845 = vmatpush2.bf16.msra.mxu0 0
        %846 = vmatprep.subr.bf16.mxu0 0
        %847 = vmatpush2.bf16.msra.mxu0 0
        %848 = vmatprep.subr.bf16.mxu0 0
        %849 = vmatpush2.bf16.msra.mxu0 0
        %850 = vmatprep.subr.bf16.mxu0 0
        %851 = vmatpush2.bf16.msra.mxu0 0
        %852 = vmatprep.mubr.bf16.mxu0 0
        %853 = vmatmul.mubr.bf16.gmra.mxu0 %v517
        %v854 = vpop.f32.mrf.mxu0
        %v855 = vadd.f32 %v298, %v854
        %v856 = vpop.f32.mrf.mxu0
        %v857 = vadd.f32 %v298, %v856
        %v858 = vpop.f32.mrf.mxu0
        %v859 = vadd.f32 %v303, %v858
        %v860 = vpop.f32.mrf.mxu0
        %v861 = vadd.f32 %v303, %v860
        %862 = vmatprep.mubr.bf16.mxu0 0
        %863 = vmatmul.mubr.bf16.gmra.mxu0 %v520
        %v864 = vpop.f32.mrf.mxu0
        %v865 = vadd.f32 %v308, %v864
        %v866 = vpop.f32.mrf.mxu0
        %v867 = vadd.f32 %v308, %v866
        %v868 = vpop.f32.mrf.mxu0
        %v869 = vadd.f32 %v313, %v868
        %v870 = vpop.f32.mrf.mxu0
        %v871 = vadd.f32 %v313, %v870
        %872 = vmatprep.mubr.bf16.mxu0 0
        %873 = vmatmul.mubr.bf16.gmra.mxu0 %v523
        %v874 = vpop.f32.mrf.mxu0
        %v875 = vadd.f32 %v318, %v874
        %v876 = vpop.f32.mrf.mxu0
        %v877 = vadd.f32 %v318, %v876
        %v878 = vpop.f32.mrf.mxu0
        %v879 = vadd.f32 %v323, %v878
        %v880 = vpop.f32.mrf.mxu0
        %v881 = vadd.f32 %v323, %v880
        %882 = vmatprep.mubr.bf16.mxu0 0
        %883 = vmatmul.mubr.bf16.gmra.mxu0 %v526
        %v884 = vpop.f32.mrf.mxu0
        %v885 = vadd.f32 %v328, %v884
        %v886 = vpop.f32.mrf.mxu0
        %v887 = vadd.f32 %v328, %v886
        %v888 = vpop.f32.mrf.mxu0
        %v889 = vadd.f32 %v333, %v888
        %v890 = vpop.f32.mrf.mxu0
        %v891 = vadd.f32 %v333, %v890
        %892 = vdwg.mxu0
        %893 = vmatprep.subr.bf16.mxu0 0
        %894 = vmatpush1.bf16.msra.mxu0 0
        %895 = vmatprep.subr.bf16.mxu0 0
        %896 = vmatpush1.bf16.msra.mxu0 0
        %897 = vmatprep.subr.bf16.mxu0 0
        %898 = vmatpush1.bf16.msra.mxu0 0
        %899 = vmatprep.subr.bf16.mxu0 0
        %900 = vmatpush1.bf16.msra.mxu0 0
        %901 = vmatprep.subr.bf16.mxu0 0
        %902 = vmatpush1.bf16.msra.mxu0 0
        %903 = vmatprep.subr.bf16.mxu0 0
        %904 = vmatpush1.bf16.msra.mxu0 0
        %905 = vmatprep.subr.bf16.mxu0 %v478
        %906 = vmatpush1.bf16.msra.mxu0 %v477
        %907 = vmatprep.subr.bf16.mxu0 %v462
        %908 = vmatpush1.bf16.msra.mxu0 %v461
        %909 = vmatprep.subr.bf16.mxu0 0
        %910 = vmatpush2.bf16.msra.mxu0 0
        %911 = vmatprep.subr.bf16.mxu0 0
        %912 = vmatpush2.bf16.msra.mxu0 0
        %913 = vmatprep.subr.bf16.mxu0 0
        %914 = vmatpush2.bf16.msra.mxu0 0
        %915 = vmatprep.subr.bf16.mxu0 0
        %916 = vmatpush2.bf16.msra.mxu0 0
        %917 = vmatprep.subr.bf16.mxu0 0
        %918 = vmatpush2.bf16.msra.mxu0 0
        %919 = vmatprep.subr.bf16.mxu0 0
        %920 = vmatpush2.bf16.msra.mxu0 0
        %921 = vmatprep.subr.bf16.mxu0 0
        %922 = vmatpush2.bf16.msra.mxu0 0
        %923 = vmatprep.subr.bf16.mxu0 0
        %924 = vmatpush2.bf16.msra.mxu0 0
        %925 = vmatprep.mubr.bf16.mxu0 0
        %926 = vmatmul.mubr.bf16.gmra.mxu0 %v517
        %v927 = vpop.f32.mrf.mxu0
        %v928 = vadd.f32 %v298, %v927
        %v929 = vpop.f32.mrf.mxu0
        %v930 = vadd.f32 %v298, %v929
        %v931 = vpop.f32.mrf.mxu0
        %v932 = vadd.f32 %v303, %v931
        %v933 = vpop.f32.mrf.mxu0
        %v934 = vadd.f32 %v303, %v933
        %935 = vmatprep.mubr.bf16.mxu0 0
        %936 = vmatmul.mubr.bf16.gmra.mxu0 %v520
        %v937 = vpop.f32.mrf.mxu0
        %v938 = vadd.f32 %v308, %v937
        %v939 = vpop.f32.mrf.mxu0
        %v940 = vadd.f32 %v308, %v939
        %v941 = vpop.f32.mrf.mxu0
        %v942 = vadd.f32 %v313, %v941
        %v943 = vpop.f32.mrf.mxu0
        %v944 = vadd.f32 %v313, %v943
        %945 = vmatprep.mubr.bf16.mxu0 0
        %946 = vmatmul.mubr.bf16.gmra.mxu0 %v523
        %v947 = vpop.f32.mrf.mxu0
        %v948 = vadd.f32 %v318, %v947
        %v949 = vpop.f32.mrf.mxu0
        %v950 = vadd.f32 %v318, %v949
        %v951 = vpop.f32.mrf.mxu0
        %v952 = vadd.f32 %v323, %v951
        %v953 = vpop.f32.mrf.mxu0
        %v954 = vadd.f32 %v323, %v953
        %955 = vmatprep.mubr.bf16.mxu0 0
        %956 = vmatmul.mubr.bf16.gmra.mxu0 %v526
        %v957 = vpop.f32.mrf.mxu0
        %v958 = vadd.f32 %v328, %v957
        %v959 = vpop.f32.mrf.mxu0
        %v960 = vadd.f32 %v328, %v959
        %v961 = vpop.f32.mrf.mxu0
        %v962 = vadd.f32 %v333, %v961
        %v963 = vpop.f32.mrf.mxu0
        %v964 = vadd.f32 %v333, %v963
        %965 = vdwg.mxu0
        %966 = vmatprep.subr.bf16.mxu0 0
        %967 = vmatpush1.bf16.msra.mxu0 0
        %968 = vmatprep.subr.bf16.mxu0 0
        %969 = vmatpush1.bf16.msra.mxu0 0
        %970 = vmatprep.subr.bf16.mxu0 0
        %971 = vmatpush1.bf16.msra.mxu0 0
        %972 = vmatprep.subr.bf16.mxu0 0
        %973 = vmatpush1.bf16.msra.mxu0 0
        %974 = vmatprep.subr.bf16.mxu0 0
        %975 = vmatpush1.bf16.msra.mxu0 0
        %976 = vmatprep.subr.bf16.mxu0 0
        %977 = vmatpush1.bf16.msra.mxu0 0
        %978 = vmatprep.subr.bf16.mxu0 %v480
        %979 = vmatpush1.bf16.msra.mxu0 %v479
        %980 = vmatprep.subr.bf16.mxu0 %v464
        %981 = vmatpush1.bf16.msra.mxu0 %v463
        %982 = vmatprep.subr.bf16.mxu0 0
        %983 = vmatpush2.bf16.msra.mxu0 0
        %984 = vmatprep.subr.bf16.mxu0 0
        %985 = vmatpush2.bf16.msra.mxu0 0
        %986 = vmatprep.subr.bf16.mxu0 0
        %987 = vmatpush2.bf16.msra.mxu0 0
        %988 = vmatprep.subr.bf16.mxu0 0
        %989 = vmatpush2.bf16.msra.mxu0 0
        %990 = vmatprep.subr.bf16.mxu0 0
        %991 = vmatpush2.bf16.msra.mxu0 0
        %992 = vmatprep.subr.bf16.mxu0 0
        %993 = vmatpush2.bf16.msra.mxu0 0
        %994 = vmatprep.subr.bf16.mxu0 0
        %995 = vmatpush2.bf16.msra.mxu0 0
        %996 = vmatprep.subr.bf16.mxu0 0
        %997 = vmatpush2.bf16.msra.mxu0 0
        %998 = vmatprep.mubr.bf16.mxu0 0
        %999 = vmatmul.mubr.bf16.gmra.mxu0 %v517
        %v1000 = vpop.f32.mrf.mxu0
        %v1001 = vadd.f32 %v298, %v1000
        %v1002 = vpop.f32.mrf.mxu0
        %v1003 = vadd.f32 %v298, %v1002
        %v1004 = vpop.f32.mrf.mxu0
        %v1005 = vadd.f32 %v303, %v1004
        %v1006 = vpop.f32.mrf.mxu0
        %v1007 = vadd.f32 %v303, %v1006
        %1008 = vmatprep.mubr.bf16.mxu0 0
        %1009 = vmatmul.mubr.bf16.gmra.mxu0 %v520
        %v1010 = vpop.f32.mrf.mxu0
        %v1011 = vadd.f32 %v308, %v1010
        %v1012 = vpop.f32.mrf.mxu0
        %v1013 = vadd.f32 %v308, %v1012
        %v1014 = vpop.f32.mrf.mxu0
        %v1015 = vadd.f32 %v313, %v1014
        %v1016 = vpop.f32.mrf.mxu0
        %v1017 = vadd.f32 %v313, %v1016
        %1018 = vmatprep.mubr.bf16.mxu0 0
        %1019 = vmatmul.mubr.bf16.gmra.mxu0 %v523
        %v1020 = vpop.f32.mrf.mxu0
        %v1021 = vadd.f32 %v318, %v1020
        %v1022 = vpop.f32.mrf.mxu0
        %v1023 = vadd.f32 %v318, %v1022
        %v1024 = vpop.f32.mrf.mxu0
        %v1025 = vadd.f32 %v323, %v1024
        %v1026 = vpop.f32.mrf.mxu0
        %v1027 = vadd.f32 %v323, %v1026
        %1028 = vmatprep.mubr.bf16.mxu0 0
        %1029 = vmatmul.mubr.bf16.gmra.mxu0 %v526
        %v1030 = vpop.f32.mrf.mxu0
        %v1031 = vadd.f32 %v328, %v1030
        %v1032 = vpop.f32.mrf.mxu0
        %v1033 = vadd.f32 %v328, %v1032
        %v1034 = vpop.f32.mrf.mxu0
        %v1035 = vadd.f32 %v333, %v1034
        %v1036 = vpop.f32.mrf.mxu0
        %v1037 = vadd.f32 %v333, %v1036
        %1038 = vdwg.mxu0
        %1039 = vmatprep.subr.bf16.mxu0 0
        %1040 = vmatpush1.bf16.msra.mxu0 0
        %1041 = vmatprep.subr.bf16.mxu0 0
        %1042 = vmatpush1.bf16.msra.mxu0 0
        %1043 = vmatprep.subr.bf16.mxu0 0
        %1044 = vmatpush1.bf16.msra.mxu0 0
        %1045 = vmatprep.subr.bf16.mxu0 0
        %1046 = vmatpush1.bf16.msra.mxu0 0
        %1047 = vmatprep.subr.bf16.mxu0 0
        %1048 = vmatpush1.bf16.msra.mxu0 0
        %1049 = vmatprep.subr.bf16.mxu0 0
        %1050 = vmatpush1.bf16.msra.mxu0 0
        %1051 = vmatprep.subr.bf16.mxu0 %v482
        %1052 = vmatpush1.bf16.msra.mxu0 %v481
        %1053 = vmatprep.subr.bf16.mxu0 %v466
        %1054 = vmatpush1.bf16.msra.mxu0 %v465
        %1055 = vmatprep.subr.bf16.mxu0 0
        %1056 = vmatpush2.bf16.msra.mxu0 0
        %1057 = vmatprep.subr.bf16.mxu0 0
        %1058 = vmatpush2.bf16.msra.mxu0 0
        %1059 = vmatprep.subr.bf16.mxu0 0
        %1060 = vmatpush2.bf16.msra.mxu0 0
        %1061 = vmatprep.subr.bf16.mxu0 0
        %1062 = vmatpush2.bf16.msra.mxu0 0
        %1063 = vmatprep.subr.bf16.mxu0 0
        %1064 = vmatpush2.bf16.msra.mxu0 0
        %1065 = vmatprep.subr.bf16.mxu0 0
        %1066 = vmatpush2.bf16.msra.mxu0 0
        %1067 = vmatprep.subr.bf16.mxu0 0
        %1068 = vmatpush2.bf16.msra.mxu0 0
        %1069 = vmatprep.subr.bf16.mxu0 0
        %1070 = vmatpush2.bf16.msra.mxu0 0
        %1071 = vmatprep.mubr.bf16.mxu0 0
        %1072 = vmatmul.mubr.bf16.gmra.mxu0 %v517
        %v1073 = vpop.f32.mrf.mxu0
        %v1074 = vadd.f32 %v298, %v1073
        %v1075 = vpop.f32.mrf.mxu0
        %v1076 = vadd.f32 %v298, %v1075
        %v1077 = vpop.f32.mrf.mxu0
        %v1078 = vadd.f32 %v303, %v1077
        %v1079 = vpop.f32.mrf.mxu0
        %v1080 = vadd.f32 %v303, %v1079
        %1081 = vmatprep.mubr.bf16.mxu0 0
        %1082 = vmatmul.mubr.bf16.gmra.mxu0 %v520
        %v1083 = vpop.f32.mrf.mxu0
        %v1084 = vadd.f32 %v308, %v1083
        %v1085 = vpop.f32.mrf.mxu0
        %v1086 = vadd.f32 %v308, %v1085
        %v1087 = vpop.f32.mrf.mxu0
        %v1088 = vadd.f32 %v313, %v1087
        %v1089 = vpop.f32.mrf.mxu0
        %v1090 = vadd.f32 %v313, %v1089
        %1091 = vmatprep.mubr.bf16.mxu0 0
        %1092 = vmatmul.mubr.bf16.gmra.mxu0 %v523
        %v1093 = vpop.f32.mrf.mxu0
        %v1094 = vadd.f32 %v318, %v1093
        %v1095 = vpop.f32.mrf.mxu0
        %v1096 = vadd.f32 %v318, %v1095
        %v1097 = vpop.f32.mrf.mxu0
        %v1098 = vadd.f32 %v323, %v1097
        %v1099 = vpop.f32.mrf.mxu0
        %v1100 = vadd.f32 %v323, %v1099
        %1101 = vmatprep.mubr.bf16.mxu0 0
        %1102 = vmatmul.mubr.bf16.gmra.mxu0 %v526
        %v1103 = vpop.f32.mrf.mxu0
        %v1104 = vadd.f32 %v328, %v1103
        %v1105 = vpop.f32.mrf.mxu0
        %v1106 = vadd.f32 %v328, %v1105
        %v1107 = vpop.f32.mrf.mxu0
        %v1108 = vadd.f32 %v333, %v1107
        %v1109 = vpop.f32.mrf.mxu0
        %v1110 = vadd.f32 %v333, %v1109
        %1111 = vdwg.mxu0
        %v1112 = vmax.f32 %v563, 0.0
        %v1113 = vmax.f32 %v565, 0.0
        %v1114 = vmax.f32 %v636, 0.0
        %v1115 = vmax.f32 %v638, 0.0
        %v1116 = vmax.f32 %v709, 0.0
        %v1117 = vmax.f32 %v711, 0.0
        %v1118 = vmax.f32 %v782, 0.0
        %v1119 = vmax.f32 %v784, 0.0
        %v1120 = vmax.f32 %v855, 0.0
        %v1121 = vmax.f32 %v857, 0.0
        %v1122 = vmax.f32 %v928, 0.0
        %v1123 = vmax.f32 %v930, 0.0
        %v1124 = vmax.f32 %v1001, 0.0
        %v1125 = vmax.f32 %v1003, 0.0
        %v1126 = vmax.f32 %v1074, 0.0
        %v1127 = vmax.f32 %v1076, 0.0
        %v1128 = vmax.f32 %v567, 0.0
        %v1129 = vmax.f32 %v569, 0.0
        %v1130 = vmax.f32 %v640, 0.0
        %v1131 = vmax.f32 %v642, 0.0
        %v1132 = vmax.f32 %v713, 0.0
        %v1133 = vmax.f32 %v715, 0.0
        %v1134 = vmax.f32 %v786, 0.0
        %v1135 = vmax.f32 %v788, 0.0
        %v1136 = vmax.f32 %v859, 0.0
        %v1137 = vmax.f32 %v861, 0.0
        %v1138 = vmax.f32 %v932, 0.0
        %v1139 = vmax.f32 %v934, 0.0
        %v1140 = vmax.f32 %v1005, 0.0
        %v1141 = vmax.f32 %v1007, 0.0
        %v1142 = vmax.f32 %v1078, 0.0
        %v1143 = vmax.f32 %v1080, 0.0
        %v1144 = vmax.f32 %v573, 0.0
        %v1145 = vmax.f32 %v575, 0.0
        %v1146 = vmax.f32 %v646, 0.0
        %v1147 = vmax.f32 %v648, 0.0
        %v1148 = vmax.f32 %v719, 0.0
        %v1149 = vmax.f32 %v721, 0.0
        %v1150 = vmax.f32 %v792, 0.0
        %v1151 = vmax.f32 %v794, 0.0
        %v1152 = vmax.f32 %v865, 0.0
        %v1153 = vmax.f32 %v867, 0.0
        %v1154 = vmax.f32 %v938, 0.0
        %v1155 = vmax.f32 %v940, 0.0
        %v1156 = vmax.f32 %v1011, 0.0
        %v1157 = vmax.f32 %v1013, 0.0
        %v1158 = vmax.f32 %v1084, 0.0
        %v1159 = vmax.f32 %v1086, 0.0
        %v1160 = vmax.f32 %v577, 0.0
        %v1161 = vmax.f32 %v579, 0.0
        %v1162 = vmax.f32 %v650, 0.0
        %v1163 = vmax.f32 %v652, 0.0
        %v1164 = vmax.f32 %v723, 0.0
        %v1165 = vmax.f32 %v725, 0.0
        %v1166 = vmax.f32 %v796, 0.0
        %v1167 = vmax.f32 %v798, 0.0
        %v1168 = vmax.f32 %v869, 0.0
        %v1169 = vmax.f32 %v871, 0.0
        %v1170 = vmax.f32 %v942, 0.0
        %v1171 = vmax.f32 %v944, 0.0
        %v1172 = vmax.f32 %v1015, 0.0
        %v1173 = vmax.f32 %v1017, 0.0
        %v1174 = vmax.f32 %v1088, 0.0
        %v1175 = vmax.f32 %v1090, 0.0
        %v1176 = vmax.f32 %v583, 0.0
        %v1177 = vmax.f32 %v585, 0.0
        %v1178 = vmax.f32 %v656, 0.0
        %v1179 = vmax.f32 %v658, 0.0
        %v1180 = vmax.f32 %v729, 0.0
        %v1181 = vmax.f32 %v731, 0.0
        %v1182 = vmax.f32 %v802, 0.0
        %v1183 = vmax.f32 %v804, 0.0
        %v1184 = vmax.f32 %v875, 0.0
        %v1185 = vmax.f32 %v877, 0.0
        %v1186 = vmax.f32 %v948, 0.0
        %v1187 = vmax.f32 %v950, 0.0
        %v1188 = vmax.f32 %v1021, 0.0
        %v1189 = vmax.f32 %v1023, 0.0
        %v1190 = vmax.f32 %v1094, 0.0
        %v1191 = vmax.f32 %v1096, 0.0
        %v1192 = vmax.f32 %v587, 0.0
        %v1193 = vmax.f32 %v589, 0.0
        %v1194 = vmax.f32 %v660, 0.0
        %v1195 = vmax.f32 %v662, 0.0
        %v1196 = vmax.f32 %v733, 0.0
        %v1197 = vmax.f32 %v735, 0.0
        %v1198 = vmax.f32 %v806, 0.0
        %v1199 = vmax.f32 %v808, 0.0
        %v1200 = vmax.f32 %v879, 0.0
        %v1201 = vmax.f32 %v881, 0.0
        %v1202 = vmax.f32 %v952, 0.0
        %v1203 = vmax.f32 %v954, 0.0
        %v1204 = vmax.f32 %v1025, 0.0
        %v1205 = vmax.f32 %v1027, 0.0
        %v1206 = vmax.f32 %v1098, 0.0
        %v1207 = vmax.f32 %v1100, 0.0
        %v1208 = vmax.f32 %v593, 0.0
        %v1209 = vmax.f32 %v595, 0.0
        %v1210 = vmax.f32 %v666, 0.0
        %v1211 = vmax.f32 %v668, 0.0
        %v1212 = vmax.f32 %v739, 0.0
        %v1213 = vmax.f32 %v741, 0.0
        %v1214 = vmax.f32 %v812, 0.0
        %v1215 = vmax.f32 %v814, 0.0
        %v1216 = vmax.f32 %v885, 0.0
        %v1217 = vmax.f32 %v887, 0.0
        %v1218 = vmax.f32 %v958, 0.0
        %v1219 = vmax.f32 %v960, 0.0
        %v1220 = vmax.f32 %v1031, 0.0
        %v1221 = vmax.f32 %v1033, 0.0
        %v1222 = vmax.f32 %v1104, 0.0
        %v1223 = vmax.f32 %v1106, 0.0
        %v1224 = vmax.f32 %v597, 0.0
        %v1225 = vmax.f32 %v599, 0.0
        %v1226 = vmax.f32 %v670, 0.0
        %v1227 = vmax.f32 %v672, 0.0
        %v1228 = vmax.f32 %v743, 0.0
        %v1229 = vmax.f32 %v745, 0.0
        %v1230 = vmax.f32 %v816, 0.0
        %v1231 = vmax.f32 %v818, 0.0
        %v1232 = vmax.f32 %v889, 0.0
        %v1233 = vmax.f32 %v891, 0.0
        %v1234 = vmax.f32 %v962, 0.0
        %v1235 = vmax.f32 %v964, 0.0
        %v1236 = vmax.f32 %v1035, 0.0
        %v1237 = vmax.f32 %v1037, 0.0
        %v1238 = vmax.f32 %v1108, 0.0
        %v1239 = vmax.f32 %v1110, 0.0
        %v1240 = vld [vmem:[%s3] sm:$0xff]
        %v1241 = vld [vmem:[%s3 + $0x8] sm:$0xff]
        %v1242 = vld [vmem:[%s3 + $0x10] sm:$0xff]
        %v1243 = vld [vmem:[%s3 + $0x18] sm:$0xff]
        %v1244 = vld [vmem:[%s3 + $0x20] sm:$0xff]
        %v1245 = vld [vmem:[%s3 + $0x28] sm:$0xff]
        %v1246 = vld [vmem:[%s3 + $0x30] sm:$0xff]
        %v1247 = vld [vmem:[%s3 + $0x38] sm:$0xff]
        %1249 = vset.pattern.permute.xlu0 0
        %1250 = vperm.xlu0 %1249, %v1240
        %v1251 = vpop.permute.xlu0 %1250
        %1254 = vset.pattern.permute.xlu0 0
        %1255 = vperm.xlu0 %1254, %v1241
        %v1256 = vpop.permute.xlu0 %1255
        %1259 = vset.pattern.permute.xlu0 0
        %1260 = vperm.xlu0 %1259, %v1242
        %v1261 = vpop.permute.xlu0 %1260
        %1264 = vset.pattern.permute.xlu0 0
        %1265 = vperm.xlu0 %1264, %v1243
        %v1266 = vpop.permute.xlu0 %1265
        %1269 = vset.pattern.permute.xlu0 0
        %1270 = vperm.xlu0 %1269, %v1244
        %v1271 = vpop.permute.xlu0 %1270
        %1274 = vset.pattern.permute.xlu0 0
        %1275 = vperm.xlu0 %1274, %v1245
        %v1276 = vpop.permute.xlu0 %1275
        %1279 = vset.pattern.permute.xlu0 0
        %1280 = vperm.xlu0 %1279, %v1246
        %v1281 = vpop.permute.xlu0 %1280
        %1284 = vset.pattern.permute.xlu0 0
        %1285 = vperm.xlu0 %1284, %v1247
        %v1286 = vpop.permute.xlu0 %1285
        %v1288 = vmul.f32 %v1112, %v1251
        %v1289 = vmul.f32 %v1113, %v1251
        %v1290 = vmul.f32 %v1114, %v1251
        %v1291 = vmul.f32 %v1115, %v1251
        %v1292 = vmul.f32 %v1116, %v1251
        %v1293 = vmul.f32 %v1117, %v1251
        %v1294 = vmul.f32 %v1118, %v1251
        %v1295 = vmul.f32 %v1119, %v1251
        %v1296 = vmul.f32 %v1120, %v1251
        %v1297 = vmul.f32 %v1121, %v1251
        %v1298 = vmul.f32 %v1122, %v1251
        %v1299 = vmul.f32 %v1123, %v1251
        %v1300 = vmul.f32 %v1124, %v1251
        %v1301 = vmul.f32 %v1125, %v1251
        %v1302 = vmul.f32 %v1126, %v1251
        %v1303 = vmul.f32 %v1127, %v1251
        %v1304 = vmul.f32 %v1128, %v1256
        %v1305 = vmul.f32 %v1129, %v1256
        %v1306 = vmul.f32 %v1130, %v1256
        %v1307 = vmul.f32 %v1131, %v1256
        %v1308 = vmul.f32 %v1132, %v1256
        %v1309 = vmul.f32 %v1133, %v1256
        %v1310 = vmul.f32 %v1134, %v1256
        %v1311 = vmul.f32 %v1135, %v1256
        %v1312 = vmul.f32 %v1136, %v1256
        %v1313 = vmul.f32 %v1137, %v1256
        %v1314 = vmul.f32 %v1138, %v1256
        %v1315 = vmul.f32 %v1139, %v1256
        %v1316 = vmul.f32 %v1140, %v1256
        %v1317 = vmul.f32 %v1141, %v1256
        %v1318 = vmul.f32 %v1142, %v1256
        %v1319 = vmul.f32 %v1143, %v1256
        %v1320 = vmul.f32 %v1144, %v1261
        %v1321 = vmul.f32 %v1145, %v1261
        %v1322 = vmul.f32 %v1146, %v1261
        %v1323 = vmul.f32 %v1147, %v1261
        %v1324 = vmul.f32 %v1148, %v1261
        %v1325 = vmul.f32 %v1149, %v1261
        %v1326 = vmul.f32 %v1150, %v1261
        %v1327 = vmul.f32 %v1151, %v1261
        %v1328 = vmul.f32 %v1152, %v1261
        %v1329 = vmul.f32 %v1153, %v1261
        %v1330 = vmul.f32 %v1154, %v1261
        %v1331 = vmul.f32 %v1155, %v1261
        %v1332 = vmul.f32 %v1156, %v1261
        %v1333 = vmul.f32 %v1157, %v1261
        %v1334 = vmul.f32 %v1158, %v1261
        %v1335 = vmul.f32 %v1159, %v1261
        %v1336 = vmul.f32 %v1160, %v1266
        %v1337 = vmul.f32 %v1161, %v1266
        %v1338 = vmul.f32 %v1162, %v1266
        %v1339 = vmul.f32 %v1163, %v1266
        %v1340 = vmul.f32 %v1164, %v1266
        %v1341 = vmul.f32 %v1165, %v1266
        %v1342 = vmul.f32 %v1166, %v1266
        %v1343 = vmul.f32 %v1167, %v1266
        %v1344 = vmul.f32 %v1168, %v1266
        %v1345 = vmul.f32 %v1169, %v1266
        %v1346 = vmul.f32 %v1170, %v1266
        %v1347 = vmul.f32 %v1171, %v1266
        %v1348 = vmul.f32 %v1172, %v1266
        %v1349 = vmul.f32 %v1173, %v1266
        %v1350 = vmul.f32 %v1174, %v1266
        %v1351 = vmul.f32 %v1175, %v1266
        %v1352 = vmul.f32 %v1176, %v1271
        %v1353 = vmul.f32 %v1177, %v1271
        %v1354 = vmul.f32 %v1178, %v1271
        %v1355 = vmul.f32 %v1179, %v1271
        %v1356 = vmul.f32 %v1180, %v1271
        %v1357 = vmul.f32 %v1181, %v1271
        %v1358 = vmul.f32 %v1182, %v1271
        %v1359 = vmul.f32 %v1183, %v1271
        %v1360 = vmul.f32 %v1184, %v1271
        %v1361 = vmul.f32 %v1185, %v1271
        %v1362 = vmul.f32 %v1186, %v1271
        %v1363 = vmul.f32 %v1187, %v1271
        %v1364 = vmul.f32 %v1188, %v1271
        %v1365 = vmul.f32 %v1189, %v1271
        %v1366 = vmul.f32 %v1190, %v1271
        %v1367 = vmul.f32 %v1191, %v1271
        %v1368 = vmul.f32 %v1192, %v1276
        %v1369 = vmul.f32 %v1193, %v1276
        %v1370 = vmul.f32 %v1194, %v1276
        %v1371 = vmul.f32 %v1195, %v1276
        %v1372 = vmul.f32 %v1196, %v1276
        %v1373 = vmul.f32 %v1197, %v1276
        %v1374 = vmul.f32 %v1198, %v1276
        %v1375 = vmul.f32 %v1199, %v1276
        %v1376 = vmul.f32 %v1200, %v1276
        %v1377 = vmul.f32 %v1201, %v1276
        %v1378 = vmul.f32 %v1202, %v1276
        %v1379 = vmul.f32 %v1203, %v1276
        %v1380 = vmul.f32 %v1204, %v1276
        %v1381 = vmul.f32 %v1205, %v1276
        %v1382 = vmul.f32 %v1206, %v1276
        %v1383 = vmul.f32 %v1207, %v1276
        %v1384 = vmul.f32 %v1208, %v1281
        %v1385 = vmul.f32 %v1209, %v1281
        %v1386 = vmul.f32 %v1210, %v1281
        %v1387 = vmul.f32 %v1211, %v1281
        %v1388 = vmul.f32 %v1212, %v1281
        %v1389 = vmul.f32 %v1213, %v1281
        %v1390 = vmul.f32 %v1214, %v1281
        %v1391 = vmul.f32 %v1215, %v1281
        %v1392 = vmul.f32 %v1216, %v1281
        %v1393 = vmul.f32 %v1217, %v1281
        %v1394 = vmul.f32 %v1218, %v1281
        %v1395 = vmul.f32 %v1219, %v1281
        %v1396 = vmul.f32 %v1220, %v1281
        %v1397 = vmul.f32 %v1221, %v1281
        %v1398 = vmul.f32 %v1222, %v1281
        %v1399 = vmul.f32 %v1223, %v1281
        %v1400 = vmul.f32 %v1224, %v1286
        %v1401 = vmul.f32 %v1225, %v1286
        %v1402 = vmul.f32 %v1226, %v1286
        %v1403 = vmul.f32 %v1227, %v1286
        %v1404 = vmul.f32 %v1228, %v1286
        %v1405 = vmul.f32 %v1229, %v1286
        %v1406 = vmul.f32 %v1230, %v1286
        %v1407 = vmul.f32 %v1231, %v1286
        %v1408 = vmul.f32 %v1232, %v1286
        %v1409 = vmul.f32 %v1233, %v1286
        %v1410 = vmul.f32 %v1234, %v1286
        %v1411 = vmul.f32 %v1235, %v1286
        %v1412 = vmul.f32 %v1236, %v1286
        %v1413 = vmul.f32 %v1237, %v1286
        %v1414 = vmul.f32 %v1238, %v1286
        %v1415 = vmul.f32 %v1239, %v1286
        %v1416 = vadd.f32 %v1288, %v1304
        %v1417 = vadd.f32 %v1416, %v1320
        %v1418 = vadd.f32 %v1417, %v1336
        %v1419 = vadd.f32 %v1418, %v1352
        %v1420 = vadd.f32 %v1419, %v1368
        %v1421 = vadd.f32 %v1420, %v1384
        %v1422 = vadd.f32 %v1421, %v1400
        %v1423 = vrot.slane %v1422, 4
        %v1424 = vadd.f32 %v1422, %v1423
        %v1425 = vrot.slane %v1424, 2
        %v1426 = vadd.f32 %v1424, %v1425
        %v1427 = vrot.slane %v1426, 1
        %v1428 = vadd.f32 %v1426, %v1427
        %v1429 = vadd.f32 %v1289, %v1305
        %v1430 = vadd.f32 %v1429, %v1321
        %v1431 = vadd.f32 %v1430, %v1337
        %v1432 = vadd.f32 %v1431, %v1353
        %v1433 = vadd.f32 %v1432, %v1369
        %v1434 = vadd.f32 %v1433, %v1385
        %v1435 = vadd.f32 %v1434, %v1401
        %v1436 = vrot.slane %v1435, 4
        %v1437 = vadd.f32 %v1435, %v1436
        %v1438 = vrot.slane %v1437, 2
        %v1439 = vadd.f32 %v1437, %v1438
        %v1440 = vrot.slane %v1439, 1
        %v1441 = vadd.f32 %v1439, %v1440
        %v1442 = vadd.f32 %v1290, %v1306
        %v1443 = vadd.f32 %v1442, %v1322
        %v1444 = vadd.f32 %v1443, %v1338
        %v1445 = vadd.f32 %v1444, %v1354
        %v1446 = vadd.f32 %v1445, %v1370
        %v1447 = vadd.f32 %v1446, %v1386
        %v1448 = vadd.f32 %v1447, %v1402
        %v1449 = vrot.slane %v1448, 4
        %v1450 = vadd.f32 %v1448, %v1449
        %v1451 = vrot.slane %v1450, 2
        %v1452 = vadd.f32 %v1450, %v1451
        %v1453 = vrot.slane %v1452, 1
        %v1454 = vadd.f32 %v1452, %v1453
        %v1455 = vadd.f32 %v1291, %v1307
        %v1456 = vadd.f32 %v1455, %v1323
        %v1457 = vadd.f32 %v1456, %v1339
        %v1458 = vadd.f32 %v1457, %v1355
        %v1459 = vadd.f32 %v1458, %v1371
        %v1460 = vadd.f32 %v1459, %v1387
        %v1461 = vadd.f32 %v1460, %v1403
        %v1462 = vrot.slane %v1461, 4
        %v1463 = vadd.f32 %v1461, %v1462
        %v1464 = vrot.slane %v1463, 2
        %v1465 = vadd.f32 %v1463, %v1464
        %v1466 = vrot.slane %v1465, 1
        %v1467 = vadd.f32 %v1465, %v1466
        %v1468 = vadd.f32 %v1292, %v1308
        %v1469 = vadd.f32 %v1468, %v1324
        %v1470 = vadd.f32 %v1469, %v1340
        %v1471 = vadd.f32 %v1470, %v1356
        %v1472 = vadd.f32 %v1471, %v1372
        %v1473 = vadd.f32 %v1472, %v1388
        %v1474 = vadd.f32 %v1473, %v1404
        %v1475 = vrot.slane %v1474, 4
        %v1476 = vadd.f32 %v1474, %v1475
        %v1477 = vrot.slane %v1476, 2
        %v1478 = vadd.f32 %v1476, %v1477
        %v1479 = vrot.slane %v1478, 1
        %v1480 = vadd.f32 %v1478, %v1479
        %v1481 = vadd.f32 %v1293, %v1309
        %v1482 = vadd.f32 %v1481, %v1325
        %v1483 = vadd.f32 %v1482, %v1341
        %v1484 = vadd.f32 %v1483, %v1357
        %v1485 = vadd.f32 %v1484, %v1373
        %v1486 = vadd.f32 %v1485, %v1389
        %v1487 = vadd.f32 %v1486, %v1405
        %v1488 = vrot.slane %v1487, 4
        %v1489 = vadd.f32 %v1487, %v1488
        %v1490 = vrot.slane %v1489, 2
        %v1491 = vadd.f32 %v1489, %v1490
        %v1492 = vrot.slane %v1491, 1
        %v1493 = vadd.f32 %v1491, %v1492
        %v1494 = vadd.f32 %v1294, %v1310
        %v1495 = vadd.f32 %v1494, %v1326
        %v1496 = vadd.f32 %v1495, %v1342
        %v1497 = vadd.f32 %v1496, %v1358
        %v1498 = vadd.f32 %v1497, %v1374
        %v1499 = vadd.f32 %v1498, %v1390
        %v1500 = vadd.f32 %v1499, %v1406
        %v1501 = vrot.slane %v1500, 4
        %v1502 = vadd.f32 %v1500, %v1501
        %v1503 = vrot.slane %v1502, 2
        %v1504 = vadd.f32 %v1502, %v1503
        %v1505 = vrot.slane %v1504, 1
        %v1506 = vadd.f32 %v1504, %v1505
        %v1507 = vadd.f32 %v1295, %v1311
        %v1508 = vadd.f32 %v1507, %v1327
        %v1509 = vadd.f32 %v1508, %v1343
        %v1510 = vadd.f32 %v1509, %v1359
        %v1511 = vadd.f32 %v1510, %v1375
        %v1512 = vadd.f32 %v1511, %v1391
        %v1513 = vadd.f32 %v1512, %v1407
        %v1514 = vrot.slane %v1513, 4
        %v1515 = vadd.f32 %v1513, %v1514
        %v1516 = vrot.slane %v1515, 2
        %v1517 = vadd.f32 %v1515, %v1516
        %v1518 = vrot.slane %v1517, 1
        %v1519 = vadd.f32 %v1517, %v1518
        %v1520 = vadd.f32 %v1296, %v1312
        %v1521 = vadd.f32 %v1520, %v1328
        %v1522 = vadd.f32 %v1521, %v1344
        %v1523 = vadd.f32 %v1522, %v1360
        %v1524 = vadd.f32 %v1523, %v1376
        %v1525 = vadd.f32 %v1524, %v1392
        %v1526 = vadd.f32 %v1525, %v1408
        %v1527 = vrot.slane %v1526, 4
        %v1528 = vadd.f32 %v1526, %v1527
        %v1529 = vrot.slane %v1528, 2
        %v1530 = vadd.f32 %v1528, %v1529
        %v1531 = vrot.slane %v1530, 1
        %v1532 = vadd.f32 %v1530, %v1531
        %v1533 = vadd.f32 %v1297, %v1313
        %v1534 = vadd.f32 %v1533, %v1329
        %v1535 = vadd.f32 %v1534, %v1345
        %v1536 = vadd.f32 %v1535, %v1361
        %v1537 = vadd.f32 %v1536, %v1377
        %v1538 = vadd.f32 %v1537, %v1393
        %v1539 = vadd.f32 %v1538, %v1409
        %v1540 = vrot.slane %v1539, 4
        %v1541 = vadd.f32 %v1539, %v1540
        %v1542 = vrot.slane %v1541, 2
        %v1543 = vadd.f32 %v1541, %v1542
        %v1544 = vrot.slane %v1543, 1
        %v1545 = vadd.f32 %v1543, %v1544
        %v1546 = vadd.f32 %v1298, %v1314
        %v1547 = vadd.f32 %v1546, %v1330
        %v1548 = vadd.f32 %v1547, %v1346
        %v1549 = vadd.f32 %v1548, %v1362
        %v1550 = vadd.f32 %v1549, %v1378
        %v1551 = vadd.f32 %v1550, %v1394
        %v1552 = vadd.f32 %v1551, %v1410
        %v1553 = vrot.slane %v1552, 4
        %v1554 = vadd.f32 %v1552, %v1553
        %v1555 = vrot.slane %v1554, 2
        %v1556 = vadd.f32 %v1554, %v1555
        %v1557 = vrot.slane %v1556, 1
        %v1558 = vadd.f32 %v1556, %v1557
        %v1559 = vadd.f32 %v1299, %v1315
        %v1560 = vadd.f32 %v1559, %v1331
        %v1561 = vadd.f32 %v1560, %v1347
        %v1562 = vadd.f32 %v1561, %v1363
        %v1563 = vadd.f32 %v1562, %v1379
        %v1564 = vadd.f32 %v1563, %v1395
        %v1565 = vadd.f32 %v1564, %v1411
        %v1566 = vrot.slane %v1565, 4
        %v1567 = vadd.f32 %v1565, %v1566
        %v1568 = vrot.slane %v1567, 2
        %v1569 = vadd.f32 %v1567, %v1568
        %v1570 = vrot.slane %v1569, 1
        %v1571 = vadd.f32 %v1569, %v1570
        %v1572 = vadd.f32 %v1300, %v1316
        %v1573 = vadd.f32 %v1572, %v1332
        %v1574 = vadd.f32 %v1573, %v1348
        %v1575 = vadd.f32 %v1574, %v1364
        %v1576 = vadd.f32 %v1575, %v1380
        %v1577 = vadd.f32 %v1576, %v1396
        %v1578 = vadd.f32 %v1577, %v1412
        %v1579 = vrot.slane %v1578, 4
        %v1580 = vadd.f32 %v1578, %v1579
        %v1581 = vrot.slane %v1580, 2
        %v1582 = vadd.f32 %v1580, %v1581
        %v1583 = vrot.slane %v1582, 1
        %v1584 = vadd.f32 %v1582, %v1583
        %v1585 = vadd.f32 %v1301, %v1317
        %v1586 = vadd.f32 %v1585, %v1333
        %v1587 = vadd.f32 %v1586, %v1349
        %v1588 = vadd.f32 %v1587, %v1365
        %v1589 = vadd.f32 %v1588, %v1381
        %v1590 = vadd.f32 %v1589, %v1397
        %v1591 = vadd.f32 %v1590, %v1413
        %v1592 = vrot.slane %v1591, 4
        %v1593 = vadd.f32 %v1591, %v1592
        %v1594 = vrot.slane %v1593, 2
        %v1595 = vadd.f32 %v1593, %v1594
        %v1596 = vrot.slane %v1595, 1
        %v1597 = vadd.f32 %v1595, %v1596
        %v1598 = vadd.f32 %v1302, %v1318
        %v1599 = vadd.f32 %v1598, %v1334
        %v1600 = vadd.f32 %v1599, %v1350
        %v1601 = vadd.f32 %v1600, %v1366
        %v1602 = vadd.f32 %v1601, %v1382
        %v1603 = vadd.f32 %v1602, %v1398
        %v1604 = vadd.f32 %v1603, %v1414
        %v1605 = vrot.slane %v1604, 4
        %v1606 = vadd.f32 %v1604, %v1605
        %v1607 = vrot.slane %v1606, 2
        %v1608 = vadd.f32 %v1606, %v1607
        %v1609 = vrot.slane %v1608, 1
        %v1610 = vadd.f32 %v1608, %v1609
        %v1611 = vadd.f32 %v1303, %v1319
        %v1612 = vadd.f32 %v1611, %v1335
        %v1613 = vadd.f32 %v1612, %v1351
        %v1614 = vadd.f32 %v1613, %v1367
        %v1615 = vadd.f32 %v1614, %v1383
        %v1616 = vadd.f32 %v1615, %v1399
        %v1617 = vadd.f32 %v1616, %v1415
        %v1618 = vrot.slane %v1617, 4
        %v1619 = vadd.f32 %v1617, %v1618
        %v1620 = vrot.slane %v1619, 2
        %v1621 = vadd.f32 %v1619, %v1620
        %v1622 = vrot.slane %v1621, 1
        %v1623 = vadd.f32 %v1621, %v1622
        %s1624 = sld [smem:[#allocation2]]
        %v1625 = vstv %s1624
        %v1626 = vadd.f32 %v1428, %v1625
        %v1627 = vadd.f32 %v1441, %v1625
        %v1628 = vadd.f32 %v1454, %v1625
        %v1629 = vadd.f32 %v1467, %v1625
        %v1630 = vadd.f32 %v1480, %v1625
        %v1631 = vadd.f32 %v1493, %v1625
        %v1632 = vadd.f32 %v1506, %v1625
        %v1633 = vadd.f32 %v1519, %v1625
        %v1634 = vadd.f32 %v1532, %v1625
        %v1635 = vadd.f32 %v1545, %v1625
        %v1636 = vadd.f32 %v1558, %v1625
        %v1637 = vadd.f32 %v1571, %v1625
        %v1638 = vadd.f32 %v1584, %v1625
        %v1639 = vadd.f32 %v1597, %v1625
        %v1640 = vadd.f32 %v1610, %v1625
        %v1641 = vadd.f32 %v1623, %v1625
        %v1642 = vsub.f32 0.0, %v1626
        %v1643 = vsub.f32 0.0, %v1627
        %v1644 = vsub.f32 0.0, %v1628
        %v1645 = vsub.f32 0.0, %v1629
        %v1646 = vsub.f32 0.0, %v1630
        %v1647 = vsub.f32 0.0, %v1631
        %v1648 = vsub.f32 0.0, %v1632
        %v1649 = vsub.f32 0.0, %v1633
        %v1650 = vsub.f32 0.0, %v1634
        %v1651 = vsub.f32 0.0, %v1635
        %v1652 = vsub.f32 0.0, %v1636
        %v1653 = vsub.f32 0.0, %v1637
        %v1654 = vsub.f32 0.0, %v1638
        %v1655 = vsub.f32 0.0, %v1639
        %v1656 = vsub.f32 0.0, %v1640
        %v1657 = vsub.f32 0.0, %v1641
        %v1658 = vmul.f32 %v1642, 1.442695
        %v1659 = vpow.pop %v1658
        %v1660 = vmul.f32 %v1643, 1.442695
        %v1661 = vpow.pop %v1660
        %v1662 = vmul.f32 %v1644, 1.442695
        %v1663 = vpow.pop %v1662
        %v1664 = vmul.f32 %v1645, 1.442695
        %v1665 = vpow.pop %v1664
        %v1666 = vmul.f32 %v1646, 1.442695
        %v1667 = vpow.pop %v1666
        %v1668 = vmul.f32 %v1647, 1.442695
        %v1669 = vpow.pop %v1668
        %v1670 = vmul.f32 %v1648, 1.442695
        %v1671 = vpow.pop %v1670
        %v1672 = vmul.f32 %v1649, 1.442695
        %v1673 = vpow.pop %v1672
        %v1674 = vmul.f32 %v1650, 1.442695
        %v1675 = vpow.pop %v1674
        %v1676 = vmul.f32 %v1651, 1.442695
        %v1677 = vpow.pop %v1676
        %v1678 = vmul.f32 %v1652, 1.442695
        %v1679 = vpow.pop %v1678
        %v1680 = vmul.f32 %v1653, 1.442695
        %v1681 = vpow.pop %v1680
        %v1682 = vmul.f32 %v1654, 1.442695
        %v1683 = vpow.pop %v1682
        %v1684 = vmul.f32 %v1655, 1.442695
        %v1685 = vpow.pop %v1684
        %v1686 = vmul.f32 %v1656, 1.442695
        %v1687 = vpow.pop %v1686
        %v1688 = vmul.f32 %v1657, 1.442695
        %v1689 = vpow.pop %v1688
        %v1690 = vadd.f32 %v1659, 1.0
        %v1691 = vadd.f32 %v1661, 1.0
        %v1692 = vadd.f32 %v1663, 1.0
        %v1693 = vadd.f32 %v1665, 1.0
        %v1694 = vadd.f32 %v1667, 1.0
        %v1695 = vadd.f32 %v1669, 1.0
        %v1696 = vadd.f32 %v1671, 1.0
        %v1697 = vadd.f32 %v1673, 1.0
        %v1698 = vadd.f32 %v1675, 1.0
        %v1699 = vadd.f32 %v1677, 1.0
        %v1700 = vadd.f32 %v1679, 1.0
        %v1701 = vadd.f32 %v1681, 1.0
        %v1702 = vadd.f32 %v1683, 1.0
        %v1703 = vadd.f32 %v1685, 1.0
        %v1704 = vadd.f32 %v1687, 1.0
        %v1705 = vadd.f32 %v1689, 1.0
        %v1706 = vrcp.pop %v1690
        %v1707 = vmul.f32 1.0, %v1706
        %v1708 = vrcp.pop %v1691
        %v1709 = vmul.f32 1.0, %v1708
        %v1710 = vrcp.pop %v1692
        %v1711 = vmul.f32 1.0, %v1710
        %v1712 = vrcp.pop %v1693
        %v1713 = vmul.f32 1.0, %v1712
        %v1714 = vrcp.pop %v1694
        %v1715 = vmul.f32 1.0, %v1714
        %v1716 = vrcp.pop %v1695
        %v1717 = vmul.f32 1.0, %v1716
        %v1718 = vrcp.pop %v1696
        %v1719 = vmul.f32 1.0, %v1718
        %v1720 = vrcp.pop %v1697
        %v1721 = vmul.f32 1.0, %v1720
        %v1722 = vrcp.pop %v1698
        %v1723 = vmul.f32 1.0, %v1722
        %v1724 = vrcp.pop %v1699
        %v1725 = vmul.f32 1.0, %v1724
        %v1726 = vrcp.pop %v1700
        %v1727 = vmul.f32 1.0, %v1726
        %v1728 = vrcp.pop %v1701
        %v1729 = vmul.f32 1.0, %v1728
        %v1730 = vrcp.pop %v1702
        %v1731 = vmul.f32 1.0, %v1730
        %v1732 = vrcp.pop %v1703
        %v1733 = vmul.f32 1.0, %v1732
        %v1734 = vrcp.pop %v1704
        %v1735 = vmul.f32 1.0, %v1734
        %v1736 = vrcp.pop %v1705
        %v1737 = vmul.f32 1.0, %v1736
        %1738 = vst [vmem:[%s243] sm:$0x1] %v1707
        %1739 = vst [vmem:[%s243 + $0x1] sm:$0x1] %v1709
        %1740 = vst [vmem:[%s243 + $0x2] sm:$0x1] %v1711
        %1741 = vst [vmem:[%s243 + $0x3] sm:$0x1] %v1713
        %1742 = vst [vmem:[%s243 + $0x4] sm:$0x1] %v1715
        %1743 = vst [vmem:[%s243 + $0x5] sm:$0x1] %v1717
        %1744 = vst [vmem:[%s243 + $0x6] sm:$0x1] %v1719
        %1745 = vst [vmem:[%s243 + $0x7] sm:$0x1] %v1721
        %1746 = vst [vmem:[%s243 + $0x8] sm:$0x1] %v1723
        %1747 = vst [vmem:[%s243 + $0x9] sm:$0x1] %v1725
        %1748 = vst [vmem:[%s243 + $0xa] sm:$0x1] %v1727
        %1749 = vst [vmem:[%s243 + $0xb] sm:$0x1] %v1729
        %1750 = vst [vmem:[%s243 + $0xc] sm:$0x1] %v1731
        %1751 = vst [vmem:[%s243 + $0xd] sm:$0x1] %v1733
        %1752 = vst [vmem:[%s243 + $0xe] sm:$0x1] %v1735
        %1753 = vst [vmem:[%s243 + $0xf] sm:$0x1] %v1737
        %s1754 = sand.u32 %s141, 1
        %s1755 = scalar_lea.sflag [#allocation5], %s1754
        %s1756 = sand.u32 %s141, 1
        %s1757 = smul.addr %s1756, 16
        %s1758 = scalar_lea.vmem [#allocation6], %s1757
        // Predicated region
        $region45: #{tpu_custom_call.1} parent=39 // pred_check
          %p1759 = pneg %p151
        $region46: #{tpu_custom_call.1} parent=39 // pred_check_branch
          %1761 = sbr.rel (%p1759) target = $region48
        $region47: #{tpu_custom_call.1} parent=39 // pred_region
          %s1762 = smul.u32 2, %s23
          %s1764 = ssub.s32 256, 256
          %1765 = vsyncadd %s1755, %s1764
          %s1766 = smul.addr %s1762, 128
          %s1767 = scalar_lea.hbm %s5, %s1766
          %s1768 = sshll.u32 %s1758, 4
          %s1769 = int_to_ptr.vmem [resolvable:$true] %s1768
          %1774 = dma.vmem_to_hbm [thread:$0]  %s1769, 256, %s1767, %s1755, 128, 128, 8
        $region48: #{tpu_custom_call.1} parent=39 // pred_fallthru
          _
      $region40: #{tpu_custom_call.1} parent=5 // pred_fallthru
        _
      %p1775 = scmp.le.s32.totalorder 2, %s18
      // Predicated region
      $region49: #{tpu_custom_call.1} parent=5 // pred_check
        %p1776 = pneg %p1775
      $region50: #{tpu_custom_call.1} parent=5 // pred_check_branch
        %1778 = sbr.rel (%p1776) target = $region52
      $region51: #{tpu_custom_call.1} parent=5 // pred_region
        %s1779 = ssub.s32 %s18, 2
        // Predicated region
        $region53: #{tpu_custom_call.1} parent=51 // pred_check
          %p1780 = pneg %p157
        $region54: #{tpu_custom_call.1} parent=51 // pred_check_branch
          %1782 = sbr.rel (%p1780) target = $region56
        $region55: #{tpu_custom_call.1} parent=51 // pred_region
          %s1783 = sand.u32 %s142, 1
          %s1784 = scalar_lea.sflag [#allocation5], %s1783
          %s1785 = sand.u32 %s142, 1
          %s1786 = smul.addr %s1785, 16
          %s1787 = scalar_lea.vmem [#allocation6], %s1786
          %1788 = dma.done %s1784, 256
        $region56: #{tpu_custom_call.1} parent=51 // pred_fallthru
          _
      $region52: #{tpu_custom_call.1} parent=5 // pred_fallthru
        _
    $region6: #{tpu_custom_call.1} parent=1 // loop_footer
      %s22 = sadd.s32 1, %s18
    $region7: #{tpu_custom_call.1} parent=1 // loop_footer_branch
      %17 = sbr.rel target = $region3
    $region8: #{tpu_custom_call.1} parent=1 // loop_exit
      _
    %1789 = vsyncpa [#allocation4], 1
    %s1790 = scalar_lea.sflag [#allocation4], 1
    %1791 = vsyncpa %s1790, 1
    %1792 = vsyncpa [#allocation5], 1
    %s1793 = scalar_lea.sflag [#allocation5], 1
    %1794 = vsyncpa %s1793, 1

</llo_original>
